<compile_context>
chip_gen: v7x
topology: tpu7x:2x2x1
jax: 0.10.0
libtpu: 0.0.40
codegen_flags: <defaults>
</compile_context>

<pallas_src>
import functools
import math

import jax
import jax.numpy as jnp
import numpy as np
from jax.experimental import pallas as pl
from jax.experimental.pallas import tpu as pltpu


def _gelu_tanh(x):
    # Matches torch.nn.GELU(approximate='tanh')
    c = jnp.sqrt(2.0 / jnp.pi).astype(x.dtype)
    return 0.5 * x * (1.0 + jnp.tanh(c * (x + 0.044715 * x * x * x)))


def attention_kernel(v_ref, x_ref,
                     gw1_ref, gb1_ref, gw2_ref, gb2_ref,
                     fw1_ref, fb1_ref, fw2_ref, fb2_ref,
                     mask_ref, out_ref,
                     *, n_w, n_links, seq_len, batch_tile, compute_dtype):
    """One grid step = `batch_tile` batch elements stacked along rows (R, E)."""
    rows = batch_tile * seq_len
    L = n_links

    v = v_ref[...]                               # (R, E), compute_dtype
    x = x_ref[...]                               # (R, E), compute_dtype

    # ---- g MLP: Linear(E->H) -> GELU(tanh) -> Linear(H->E) (batch-stacked) ----
    h = _gelu_tanh(jnp.dot(v, gw1_ref[...], preferred_element_type=jnp.float32)
                   + gb1_ref[...])                               # (R, H) f32
    v = jnp.dot(h.astype(compute_dtype), gw2_ref[...],
                preferred_element_type=jnp.float32) + gb2_ref[...]   # (R, E) f32

    # ---- Hoisted fs MLPs (depend only on x, not v): two lane-dense matmuls ----
    hw = _gelu_tanh(jnp.dot(x, fw1_ref[...], preferred_element_type=jnp.float32)
                    + fb1_ref[...])                              # (R, n_w*H) f32
    w_all = (jnp.dot(hw.astype(compute_dtype), fw2_ref[...],
                     preferred_element_type=jnp.float32)
             + fb2_ref[...])                                     # (R, n_w*L) f32

    if batch_tile > 1:
        # Pre-split the link weights by wrap mask once (m-invariant, lane-dense):
        # w_in -> rows whose whole-slab roll stays inside the batch element,
        # w_out -> rows whose roll wrapped into the next batch (use the fix roll).
        mask = mask_ref[...]                                     # (R, n_w*L)
        w_in = w_all * mask
        w_out = w_all - w_in

    # ---- chord spmm stages: sum of circular shifts (XLU rolls), f32 ----
    # n_w = ceil(log2 S) is small; Python unroll keeps LLO scheduling visibility.
    for m in range(n_w):
        res = v
        off = m * L
        acc = w_all[:, off:off + 1] * res                        # k = 0: self link
        for k in range(1, L):
            d = 1 << (k - 1)                                     # chord distance < S
            # whole-slab roll: row i reads row (i + d) mod R
            rolled = pltpu.roll(res, shift=rows - d, axis=0)
            if batch_tile > 1:
                # rows within d of a batch boundary must instead read row
                # (i + d - S) of the SAME batch element.
                fix = pltpu.roll(res, shift=seq_len - d, axis=0)
                acc = acc + w_in[:, off + k:off + k + 1] * rolled \
                          + w_out[:, off + k:off + k + 1] * fix
            else:
                acc = acc + w_all[:, off + k:off + k + 1] * rolled
        v = acc + res                                            # residual

    out_ref[...] = v.astype(out_ref.dtype)


def _pick_batch_tile(B, S, max_rows=2048, min_rows_per_step=256):
    """Prefer a single grid step (per-step overhead ~0.35us dominates at small
    sizes; single-TC v5e/v6e gain nothing from splitting).  Only split when each
    step still has >= min_rows_per_step rows (worth 2x on v7x megacore)."""
    divisors = [c for c in range(1, B + 1) if B % c == 0]
    fits = [c for c in divisors if c * S <= max_rows]
    if not fits:
        return 1
    split = [c for c in fits if B // c >= 2 and c * S >= min_rows_per_step]
    if split:
        return max(split)
    return max(fits)


def attention_forward(V, X, params, *, n_w, n_links, batch_tile=None,
                      compute_dtype=jnp.bfloat16):
    B, S, E = V.shape
    gw1, gb1, gw2, gb2, fw1, fb1, fw2, fb2 = params
    H = gw1.shape[1]
    L = n_links

    # The roll formulation requires every chord distance to stay inside one
    # sequence (true for n_links = ceil(log2 S) + 1, i.e. the chord protocol).
    dists = [0] + [2 ** k for k in range(L - 1)]
    assert max(dists) < S, "chord distance >= seq_len unsupported by roll formulation"

    if batch_tile is None:
        batch_tile = _pick_batch_tile(B, S)
    assert B % batch_tile == 0
    R = batch_tile * S
    steps = B // batch_tile
    grid = (steps,)

    cdt = compute_dtype
    cdt_bytes = jnp.dtype(cdt).itemsize

    # Batch-stacked 2-D row slabs; matmul operands in compute dtype (bf16 halves
    # input/weight DMA and uses the native MXU path on v6e/v7x).
    V2 = V.reshape(B * S, E).astype(cdt)
    X2 = X.reshape(B * S, E).astype(cdt)

    # Pack the n_w fs-MLPs: one (E, n_w*H) input weight (lane-dense hidden slab)
    # and one block-diagonal (n_w*H, n_w*L) output weight.
    fw1_cat = jnp.transpose(fw1, (1, 0, 2)).reshape(E, n_w * H).astype(cdt)
    fb1_cat = fb1.reshape(1, n_w * H).astype(jnp.float32)
    fw2_bd = jnp.zeros((n_w * H, n_w * L), dtype=jnp.float32)
    for m in range(n_w):
        fw2_bd = fw2_bd.at[m * H:(m + 1) * H, m * L:(m + 1) * L].set(fw2[m])
    fw2_bd = fw2_bd.astype(cdt)
    fb2_cat = fb2.reshape(1, n_w * L).astype(jnp.float32)

    gw1c = gw1.astype(cdt)
    gw2c = gw2.astype(cdt)
    gb1c = gb1.astype(jnp.float32)
    gb2c = gb2.astype(jnp.float32)

    # Per-column wrap mask (m-invariant, tiled to n_w*L columns): 1.0 where the
    # whole-slab roll stays inside the batch element.  Only used if batch_tile>1.
    rows_in_batch = np.arange(R) % S
    d_arr = np.asarray(dists, dtype=np.int64)
    mask = (rows_in_batch[:, None] < (S - d_arr[None, :])).astype(np.float32)   # (R, L)
    mask_full = jnp.asarray(np.tile(mask, (1, n_w)))                            # (R, n_w*L)

    kernel = functools.partial(attention_kernel, n_w=n_w, n_links=L, seq_len=S,
                               batch_tile=batch_tile, compute_dtype=cdt)

    # Advisory cost estimate for the XLA scheduler.
    flops = (4 * B * S * E * H                               # g MLP
             + 2 * B * S * E * (n_w * H)                     # fs hidden (lane-dense)
             + 2 * B * S * (n_w * H) * (n_w * L)             # fs out (block-diag)
             + n_w * (2 * L + 1) * B * S * E)                # chord accumulate + residual
    transcendentals = B * S * H * (1 + n_w)                  # tanh in GELU
    weight_bytes = (2 * E * H * cdt_bytes + (H + E) * 4
                    + E * n_w * H * cdt_bytes + n_w * H * 4
                    + (n_w * H) * (n_w * L) * cdt_bytes + n_w * L * 4
                    + R * n_w * L * 4)
    io_bytes = 2 * B * S * E * cdt_bytes + B * S * E * 4
    bytes_accessed = steps * weight_bytes + io_bytes

    out2 = pl.pallas_call(
        kernel,
        out_shape=jax.ShapeDtypeStruct((B * S, E), jnp.float32),
        grid_spec=pltpu.PrefetchScalarGridSpec(
            num_scalar_prefetch=0,
            grid=grid,
            in_specs=[
                pl.BlockSpec((R, E), lambda i: (i, 0)),                  # V rows
                pl.BlockSpec((R, E), lambda i: (i, 0)),                  # input rows
                pl.BlockSpec((E, H), lambda i: (0, 0)),                  # g.W1
                pl.BlockSpec((1, H), lambda i: (0, 0)),                  # g.b1
                pl.BlockSpec((H, E), lambda i: (0, 0)),                  # g.W2
                pl.BlockSpec((1, E), lambda i: (0, 0)),                  # g.b2
                pl.BlockSpec((E, n_w * H), lambda i: (0, 0)),            # fs.W1 (concat)
                pl.BlockSpec((1, n_w * H), lambda i: (0, 0)),            # fs.b1 (concat)
                pl.BlockSpec((n_w * H, n_w * L), lambda i: (0, 0)),      # fs.W2 (blockdiag)
                pl.BlockSpec((1, n_w * L), lambda i: (0, 0)),            # fs.b2 (concat)
                pl.BlockSpec((R, n_w * L), lambda i: (0, 0)),            # wrap mask
            ],
            out_specs=pl.BlockSpec((R, E), lambda i: (i, 0)),
        ),
        compiler_params=pltpu.CompilerParams(
            dimension_semantics=("parallel",)),
        cost_estimate=pl.CostEstimate(
            flops=int(flops),
            transcendentals=int(transcendentals),
            bytes_accessed=int(bytes_accessed)),
    )(V2, X2, gw1c, gb1c, gw2c, gb2c, fw1_cat, fb1_cat, fw2_bd, fb2_cat, mask_full)

    return out2.reshape(B, S, E)


def chord_cols(n_vec, n_link):
    """Column indices of get_chord_indices_assym, shaped (n_vec, n_link)."""
    cols = []
    for i in range(n_vec):
        cols.append([i] + [(i + 2 ** k) % n_vec for k in range(n_link - 1)])
    return np.asarray(cols, dtype=np.int32)


def ref_forward(V, X, params, cols, *, n_w):
    """Pure-JAX reference mirroring the PyTorch forward (gather formulation)."""
    gw1, gb1, gw2, gb2, fw1, fb1, fw2, fb2 = params
    v = jnp.dot(_gelu_tanh(jnp.dot(V, gw1) + gb1), gw2) + gb2
    for m in range(n_w):
        res = v
        w = jnp.dot(_gelu_tanh(jnp.dot(X, fw1[m]) + fb1[m]), fw2[m]) + fb2[m]  # (B,S,L)
        gathered = v[:, cols, :]                                               # (B,S,L,E)
        v = jnp.sum(w[..., None] * gathered, axis=2) + res
    return v


if __name__ == "__main__":
    # Module hyperparameters (small, consistent with __init__/forward)
    B = 2                 # batch
    S = 16                # max_seq_len
    E = 32                # embed_size
    H = 32                # hidden_size
    n_w = math.ceil(math.log2(S))   # 4
    n_links = n_w + 1               # 5 (chord protocol)

    key = jax.random.PRNGKey(0)
    ks = jax.random.split(key, 12)
    sc = 0.1
    # Deterministic synthetic parameters (shapes from MLPBlock([hidden,'GELU'], ...))
    gw1 = jax.random.normal(ks[0], (E, H), jnp.float32) * sc
    gb1 = jax.random.normal(ks[1], (1, H), jnp.float32) * sc
    gw2 = jax.random.normal(ks[2], (H, E), jnp.float32) * sc
    gb2 = jax.random.normal(ks[3], (1, E), jnp.float32) * sc
    fw1 = jax.random.normal(ks[4], (n_w, E, H), jnp.float32) * sc
    fb1 = jax.random.normal(ks[5], (n_w, 1, H), jnp.float32) * sc
    fw2 = jax.random.normal(ks[6], (n_w, H, n_links), jnp.float32) * sc
    fb2 = jax.random.normal(ks[7], (n_w, 1, n_links), jnp.float32) * sc
    params = (gw1, gb1, gw2, gb2, fw1, fb1, fw2, fb2)

    # Inputs: V and `input`, both (B, S, E)
    V = jax.random.normal(ks[8], (B, S, E), jnp.float32)
    X = jax.random.normal(ks[9], (B, S, E), jnp.float32)

    cols = jnp.asarray(chord_cols(S, n_links))
    ref = jax.block_until_ready(ref_forward(V, X, params, cols, n_w=n_w))

    # Bit-accuracy checks in f32: per-batch grid (single roll) and batch-stacked
    # slab (two rolls + pre-masked weights).
    for bt in (1, 2):
        out = attention_forward(V, X, params, n_w=n_w, n_links=n_links,
                                batch_tile=bt, compute_dtype=jnp.float32)
        out = jax.block_until_ready(out)
        np.testing.assert_allclose(np.asarray(out), np.asarray(ref),
                                   rtol=2e-5, atol=2e-5)

    # Default perf path: bf16 matmul operands (f32 accumulation), auto batch
    # tile (collapses to a single grid step at this size).
    out = attention_forward(V, X, params, n_w=n_w, n_links=n_links)
    out = jax.block_until_ready(out)
    np.testing.assert_allclose(np.asarray(out), np.asarray(ref),
                               rtol=3e-2, atol=3e-2)

    print("KERNEL_OK")
</pallas_src>

<mosaic_0001>
module attributes {stable_mosaic.version = 11 : i64} {
  func.func @attention_kernel(%arg0: i32, %arg1: memref<16x32xf32, #tpu.memory_space<vmem>>, %arg2: memref<16x32xf32, #tpu.memory_space<vmem>>, %arg3: memref<32x32xf32, #tpu.memory_space<vmem>>, %arg4: memref<1x32xf32, #tpu.memory_space<vmem>>, %arg5: memref<32x32xf32, #tpu.memory_space<vmem>>, %arg6: memref<1x32xf32, #tpu.memory_space<vmem>>, %arg7: memref<32x128xf32, #tpu.memory_space<vmem>>, %arg8: memref<1x128xf32, #tpu.memory_space<vmem>>, %arg9: memref<128x20xf32, #tpu.memory_space<vmem>>, %arg10: memref<1x20xf32, #tpu.memory_space<vmem>>, %arg11: memref<16x20xf32, #tpu.memory_space<vmem>>, %arg12: memref<16x32xf32, #tpu.memory_space<vmem>>) attributes {dimension_semantics = [#tpu.dimension_semantics<parallel>], iteration_bounds = array<i64: 2>, scalar_prefetch = 0 : i64, scratch_operands = 0 : i64, tpu.core_type = #tpu.core_type<tc>, window_params = [{transform_indices = @transform_0, window_bounds = array<i64: 16, 32>}, {transform_indices = @transform_1, window_bounds = array<i64: 16, 32>}, {pipeline_mode = #tpu.pipeline_mode<synchronous>, transform_indices = @transform_2, window_bounds = array<i64: 32, 32>}, {pipeline_mode = #tpu.pipeline_mode<synchronous>, transform_indices = @transform_3, window_bounds = array<i64: 1, 32>}, {pipeline_mode = #tpu.pipeline_mode<synchronous>, transform_indices = @transform_4, window_bounds = array<i64: 32, 32>}, {pipeline_mode = #tpu.pipeline_mode<synchronous>, transform_indices = @transform_5, window_bounds = array<i64: 1, 32>}, {pipeline_mode = #tpu.pipeline_mode<synchronous>, transform_indices = @transform_6, window_bounds = array<i64: 32, 128>}, {pipeline_mode = #tpu.pipeline_mode<synchronous>, transform_indices = @transform_7, window_bounds = array<i64: 1, 128>}, {pipeline_mode = #tpu.pipeline_mode<synchronous>, transform_indices = @transform_8, window_bounds = array<i64: 128, 20>}, {pipeline_mode = #tpu.pipeline_mode<synchronous>, transform_indices = @transform_9, window_bounds = array<i64: 1, 20>}, {pipeline_mode = #tpu.pipeline_mode<synchronous>, transform_indices = @transform_10, window_bounds = array<i64: 16, 20>}, {transform_indices = @transform_11, window_bounds = array<i64: 16, 32>}]} {
    %c0 = arith.constant 0 : index
    %c0_0 = arith.constant 0 : index
    %0 = vector.load %arg1[%c0, %c0_0] : memref<16x32xf32, #tpu.memory_space<vmem>>, vector<16x32xf32>
    %c0_1 = arith.constant 0 : index
    %c0_2 = arith.constant 0 : index
    %1 = vector.load %arg2[%c0_1, %c0_2] : memref<16x32xf32, #tpu.memory_space<vmem>>, vector<16x32xf32>
    %c0_3 = arith.constant 0 : index
    %c0_4 = arith.constant 0 : index
    %2 = vector.load %arg3[%c0_3, %c0_4] : memref<32x32xf32, #tpu.memory_space<vmem>>, vector<32x32xf32>
    %cst = arith.constant dense<0.000000e+00> : vector<16x32xf32>
    %3 = tpu.matmul %0, %2, %cst {dimension_numbers = #tpu.dot_dimension_numbers<[1], [0], [0], [1], [0, 0, 1, 1], [], []>} : vector<16x32xf32>, vector<32x32xf32>, vector<16x32xf32> -> vector<16x32xf32>
    %c0_5 = arith.constant 0 : index
    %c0_6 = arith.constant 0 : index
    %4 = vector.load %arg4[%c0_5, %c0_6] : memref<1x32xf32, #tpu.memory_space<vmem>>, vector<1x32xf32>
    %5 = vector.broadcast %4 : vector<1x32xf32> to vector<16x32xf32>
    %6 = arith.addf %3, %5 : vector<16x32xf32>
    %cst_7 = arith.constant 0.636619746 : f32
    %7 = math.sqrt %cst_7 : f32
    %cst_8 = arith.constant 5.000000e-01 : f32
    %8 = vector.broadcast %cst_8 : f32 to vector<16x32xf32>
    %9 = arith.mulf %8, %6 : vector<16x32xf32>
    %cst_9 = arith.constant 4.471500e-02 : f32
    %10 = vector.broadcast %cst_9 : f32 to vector<16x32xf32>
    %11 = arith.mulf %10, %6 : vector<16x32xf32>
    %12 = arith.mulf %11, %6 : vector<16x32xf32>
    %13 = arith.mulf %12, %6 : vector<16x32xf32>
    %14 = arith.addf %6, %13 : vector<16x32xf32>
    %15 = vector.broadcast %7 : f32 to vector<16x32xf32>
    %16 = arith.mulf %15, %14 : vector<16x32xf32>
    %17 = math.tanh %16 : vector<16x32xf32>
    %cst_10 = arith.constant 1.000000e+00 : f32
    %18 = vector.broadcast %cst_10 : f32 to vector<16x32xf32>
    %19 = arith.addf %18, %17 : vector<16x32xf32>
    %20 = arith.mulf %9, %19 : vector<16x32xf32>
    %c0_11 = arith.constant 0 : index
    %c0_12 = arith.constant 0 : index
    %21 = vector.load %arg5[%c0_11, %c0_12] : memref<32x32xf32, #tpu.memory_space<vmem>>, vector<32x32xf32>
    %cst_13 = arith.constant dense<0.000000e+00> : vector<16x32xf32>
    %22 = tpu.matmul %20, %21, %cst_13 {dimension_numbers = #tpu.dot_dimension_numbers<[1], [0], [0], [1], [0, 0, 1, 1], [], []>} : vector<16x32xf32>, vector<32x32xf32>, vector<16x32xf32> -> vector<16x32xf32>
    %c0_14 = arith.constant 0 : index
    %c0_15 = arith.constant 0 : index
    %23 = vector.load %arg6[%c0_14, %c0_15] : memref<1x32xf32, #tpu.memory_space<vmem>>, vector<1x32xf32>
    %24 = vector.broadcast %23 : vector<1x32xf32> to vector<16x32xf32>
    %25 = arith.addf %22, %24 : vector<16x32xf32>
    %c0_16 = arith.constant 0 : index
    %c0_17 = arith.constant 0 : index
    %26 = vector.load %arg7[%c0_16, %c0_17] : memref<32x128xf32, #tpu.memory_space<vmem>>, vector<32x128xf32>
    %cst_18 = arith.constant dense<0.000000e+00> : vector<16x128xf32>
    %27 = tpu.matmul %1, %26, %cst_18 {dimension_numbers = #tpu.dot_dimension_numbers<[1], [0], [0], [1], [0, 0, 1, 1], [], []>} : vector<16x32xf32>, vector<32x128xf32>, vector<16x128xf32> -> vector<16x128xf32>
    %c0_19 = arith.constant 0 : index
    %c0_20 = arith.constant 0 : index
    %28 = vector.load %arg8[%c0_19, %c0_20] : memref<1x128xf32, #tpu.memory_space<vmem>>, vector<1x128xf32>
    %29 = vector.broadcast %28 : vector<1x128xf32> to vector<16x128xf32>
    %30 = arith.addf %27, %29 : vector<16x128xf32>
    %cst_21 = arith.constant 0.636619746 : f32
    %31 = math.sqrt %cst_21 : f32
    %cst_22 = arith.constant 5.000000e-01 : f32
    %32 = vector.broadcast %cst_22 : f32 to vector<16x128xf32>
    %33 = arith.mulf %32, %30 : vector<16x128xf32>
    %cst_23 = arith.constant 4.471500e-02 : f32
    %34 = vector.broadcast %cst_23 : f32 to vector<16x128xf32>
    %35 = arith.mulf %34, %30 : vector<16x128xf32>
    %36 = arith.mulf %35, %30 : vector<16x128xf32>
    %37 = arith.mulf %36, %30 : vector<16x128xf32>
    %38 = arith.addf %30, %37 : vector<16x128xf32>
    %39 = vector.broadcast %31 : f32 to vector<16x128xf32>
    %40 = arith.mulf %39, %38 : vector<16x128xf32>
    %41 = math.tanh %40 : vector<16x128xf32>
    %cst_24 = arith.constant 1.000000e+00 : f32
    %42 = vector.broadcast %cst_24 : f32 to vector<16x128xf32>
    %43 = arith.addf %42, %41 : vector<16x128xf32>
    %44 = arith.mulf %33, %43 : vector<16x128xf32>
    %c0_25 = arith.constant 0 : index
    %c0_26 = arith.constant 0 : index
    %45 = vector.load %arg9[%c0_25, %c0_26] : memref<128x20xf32, #tpu.memory_space<vmem>>, vector<128x20xf32>
    %cst_27 = arith.constant dense<0.000000e+00> : vector<16x20xf32>
    %46 = tpu.matmul %44, %45, %cst_27 {dimension_numbers = #tpu.dot_dimension_numbers<[1], [0], [0], [1], [0, 0, 1, 1], [], []>} : vector<16x128xf32>, vector<128x20xf32>, vector<16x20xf32> -> vector<16x20xf32>
    %c0_28 = arith.constant 0 : index
    %c0_29 = arith.constant 0 : index
    %47 = vector.load %arg10[%c0_28, %c0_29] : memref<1x20xf32, #tpu.memory_space<vmem>>, vector<1x20xf32>
    %48 = vector.broadcast %47 : vector<1x20xf32> to vector<16x20xf32>
    %49 = arith.addf %46, %48 : vector<16x20xf32>
    %50 = vector.extract_strided_slice %49 {offsets = [0, 0], sizes = [16, 1], strides = [1, 1]} : vector<16x20xf32> to vector<16x1xf32>
    %51 = vector.broadcast %50 : vector<16x1xf32> to vector<16x32xf32>
    %52 = arith.mulf %51, %25 : vector<16x32xf32>
    %c15_i32 = arith.constant 15 : i32
    %53 = tpu.dynamic_rotate %25 by %c15_i32 dim 0 : vector<16x32xf32>, i32 -> vector<16x32xf32>
    %54 = vector.extract_strided_slice %49 {offsets = [0, 1], sizes = [16, 1], strides = [1, 1]} : vector<16x20xf32> to vector<16x1xf32>
    %55 = vector.broadcast %54 : vector<16x1xf32> to vector<16x32xf32>
    %56 = arith.mulf %55, %53 : vector<16x32xf32>
    %57 = arith.addf %52, %56 : vector<16x32xf32>
    %c14_i32 = arith.constant 14 : i32
    %58 = tpu.dynamic_rotate %25 by %c14_i32 dim 0 : vector<16x32xf32>, i32 -> vector<16x32xf32>
    %59 = vector.extract_strided_slice %49 {offsets = [0, 2], sizes = [16, 1], strides = [1, 1]} : vector<16x20xf32> to vector<16x1xf32>
    %60 = vector.broadcast %59 : vector<16x1xf32> to vector<16x32xf32>
    %61 = arith.mulf %60, %58 : vector<16x32xf32>
    %62 = arith.addf %57, %61 : vector<16x32xf32>
    %c12_i32 = arith.constant 12 : i32
    %63 = tpu.dynamic_rotate %25 by %c12_i32 dim 0 : vector<16x32xf32>, i32 -> vector<16x32xf32>
    %64 = vector.extract_strided_slice %49 {offsets = [0, 3], sizes = [16, 1], strides = [1, 1]} : vector<16x20xf32> to vector<16x1xf32>
    %65 = vector.broadcast %64 : vector<16x1xf32> to vector<16x32xf32>
    %66 = arith.mulf %65, %63 : vector<16x32xf32>
    %67 = arith.addf %62, %66 : vector<16x32xf32>
    %c8_i32 = arith.constant 8 : i32
    %68 = tpu.dynamic_rotate %25 by %c8_i32 dim 0 : vector<16x32xf32>, i32 -> vector<16x32xf32>
    %69 = vector.extract_strided_slice %49 {offsets = [0, 4], sizes = [16, 1], strides = [1, 1]} : vector<16x20xf32> to vector<16x1xf32>
    %70 = vector.broadcast %69 : vector<16x1xf32> to vector<16x32xf32>
    %71 = arith.mulf %70, %68 : vector<16x32xf32>
    %72 = arith.addf %67, %71 : vector<16x32xf32>
    %73 = arith.addf %72, %25 : vector<16x32xf32>
    %74 = vector.extract_strided_slice %49 {offsets = [0, 5], sizes = [16, 1], strides = [1, 1]} : vector<16x20xf32> to vector<16x1xf32>
    %75 = vector.broadcast %74 : vector<16x1xf32> to vector<16x32xf32>
    %76 = arith.mulf %75, %73 : vector<16x32xf32>
    %c15_i32_30 = arith.constant 15 : i32
    %77 = tpu.dynamic_rotate %73 by %c15_i32_30 dim 0 : vector<16x32xf32>, i32 -> vector<16x32xf32>
    %78 = vector.extract_strided_slice %49 {offsets = [0, 6], sizes = [16, 1], strides = [1, 1]} : vector<16x20xf32> to vector<16x1xf32>
    %79 = vector.broadcast %78 : vector<16x1xf32> to vector<16x32xf32>
    %80 = arith.mulf %79, %77 : vector<16x32xf32>
    %81 = arith.addf %76, %80 : vector<16x32xf32>
    %c14_i32_31 = arith.constant 14 : i32
    %82 = tpu.dynamic_rotate %73 by %c14_i32_31 dim 0 : vector<16x32xf32>, i32 -> vector<16x32xf32>
    %83 = vector.extract_strided_slice %49 {offsets = [0, 7], sizes = [16, 1], strides = [1, 1]} : vector<16x20xf32> to vector<16x1xf32>
    %84 = vector.broadcast %83 : vector<16x1xf32> to vector<16x32xf32>
    %85 = arith.mulf %84, %82 : vector<16x32xf32>
    %86 = arith.addf %81, %85 : vector<16x32xf32>
    %c12_i32_32 = arith.constant 12 : i32
    %87 = tpu.dynamic_rotate %73 by %c12_i32_32 dim 0 : vector<16x32xf32>, i32 -> vector<16x32xf32>
    %88 = vector.extract_strided_slice %49 {offsets = [0, 8], sizes = [16, 1], strides = [1, 1]} : vector<16x20xf32> to vector<16x1xf32>
    %89 = vector.broadcast %88 : vector<16x1xf32> to vector<16x32xf32>
    %90 = arith.mulf %89, %87 : vector<16x32xf32>
    %91 = arith.addf %86, %90 : vector<16x32xf32>
    %c8_i32_33 = arith.constant 8 : i32
    %92 = tpu.dynamic_rotate %73 by %c8_i32_33 dim 0 : vector<16x32xf32>, i32 -> vector<16x32xf32>
    %93 = vector.extract_strided_slice %49 {offsets = [0, 9], sizes = [16, 1], strides = [1, 1]} : vector<16x20xf32> to vector<16x1xf32>
    %94 = vector.broadcast %93 : vector<16x1xf32> to vector<16x32xf32>
    %95 = arith.mulf %94, %92 : vector<16x32xf32>
    %96 = arith.addf %91, %95 : vector<16x32xf32>
    %97 = arith.addf %96, %73 : vector<16x32xf32>
    %98 = vector.extract_strided_slice %49 {offsets = [0, 10], sizes = [16, 1], strides = [1, 1]} : vector<16x20xf32> to vector<16x1xf32>
    %99 = vector.broadcast %98 : vector<16x1xf32> to vector<16x32xf32>
    %100 = arith.mulf %99, %97 : vector<16x32xf32>
    %c15_i32_34 = arith.constant 15 : i32
    %101 = tpu.dynamic_rotate %97 by %c15_i32_34 dim 0 : vector<16x32xf32>, i32 -> vector<16x32xf32>
    %102 = vector.extract_strided_slice %49 {offsets = [0, 11], sizes = [16, 1], strides = [1, 1]} : vector<16x20xf32> to vector<16x1xf32>
    %103 = vector.broadcast %102 : vector<16x1xf32> to vector<16x32xf32>
    %104 = arith.mulf %103, %101 : vector<16x32xf32>
    %105 = arith.addf %100, %104 : vector<16x32xf32>
    %c14_i32_35 = arith.constant 14 : i32
    %106 = tpu.dynamic_rotate %97 by %c14_i32_35 dim 0 : vector<16x32xf32>, i32 -> vector<16x32xf32>
    %107 = vector.extract_strided_slice %49 {offsets = [0, 12], sizes = [16, 1], strides = [1, 1]} : vector<16x20xf32> to vector<16x1xf32>
    %108 = vector.broadcast %107 : vector<16x1xf32> to vector<16x32xf32>
    %109 = arith.mulf %108, %106 : vector<16x32xf32>
    %110 = arith.addf %105, %109 : vector<16x32xf32>
    %c12_i32_36 = arith.constant 12 : i32
    %111 = tpu.dynamic_rotate %97 by %c12_i32_36 dim 0 : vector<16x32xf32>, i32 -> vector<16x32xf32>
    %112 = vector.extract_strided_slice %49 {offsets = [0, 13], sizes = [16, 1], strides = [1, 1]} : vector<16x20xf32> to vector<16x1xf32>
    %113 = vector.broadcast %112 : vector<16x1xf32> to vector<16x32xf32>
    %114 = arith.mulf %113, %111 : vector<16x32xf32>
    %115 = arith.addf %110, %114 : vector<16x32xf32>
    %c8_i32_37 = arith.constant 8 : i32
    %116 = tpu.dynamic_rotate %97 by %c8_i32_37 dim 0 : vector<16x32xf32>, i32 -> vector<16x32xf32>
    %117 = vector.extract_strided_slice %49 {offsets = [0, 14], sizes = [16, 1], strides = [1, 1]} : vector<16x20xf32> to vector<16x1xf32>
    %118 = vector.broadcast %117 : vector<16x1xf32> to vector<16x32xf32>
    %119 = arith.mulf %118, %116 : vector<16x32xf32>
    %120 = arith.addf %115, %119 : vector<16x32xf32>
    %121 = arith.addf %120, %97 : vector<16x32xf32>
    %122 = vector.extract_strided_slice %49 {offsets = [0, 15], sizes = [16, 1], strides = [1, 1]} : vector<16x20xf32> to vector<16x1xf32>
    %123 = vector.broadcast %122 : vector<16x1xf32> to vector<16x32xf32>
    %124 = arith.mulf %123, %121 : vector<16x32xf32>
    %c15_i32_38 = arith.constant 15 : i32
    %125 = tpu.dynamic_rotate %121 by %c15_i32_38 dim 0 : vector<16x32xf32>, i32 -> vector<16x32xf32>
    %126 = vector.extract_strided_slice %49 {offsets = [0, 16], sizes = [16, 1], strides = [1, 1]} : vector<16x20xf32> to vector<16x1xf32>
    %127 = vector.broadcast %126 : vector<16x1xf32> to vector<16x32xf32>
    %128 = arith.mulf %127, %125 : vector<16x32xf32>
    %129 = arith.addf %124, %128 : vector<16x32xf32>
    %c14_i32_39 = arith.constant 14 : i32
    %130 = tpu.dynamic_rotate %121 by %c14_i32_39 dim 0 : vector<16x32xf32>, i32 -> vector<16x32xf32>
    %131 = vector.extract_strided_slice %49 {offsets = [0, 17], sizes = [16, 1], strides = [1, 1]} : vector<16x20xf32> to vector<16x1xf32>
    %132 = vector.broadcast %131 : vector<16x1xf32> to vector<16x32xf32>
    %133 = arith.mulf %132, %130 : vector<16x32xf32>
    %134 = arith.addf %129, %133 : vector<16x32xf32>
    %c12_i32_40 = arith.constant 12 : i32
    %135 = tpu.dynamic_rotate %121 by %c12_i32_40 dim 0 : vector<16x32xf32>, i32 -> vector<16x32xf32>
    %136 = vector.extract_strided_slice %49 {offsets = [0, 18], sizes = [16, 1], strides = [1, 1]} : vector<16x20xf32> to vector<16x1xf32>
    %137 = vector.broadcast %136 : vector<16x1xf32> to vector<16x32xf32>
    %138 = arith.mulf %137, %135 : vector<16x32xf32>
    %139 = arith.addf %134, %138 : vector<16x32xf32>
    %c8_i32_41 = arith.constant 8 : i32
    %140 = tpu.dynamic_rotate %121 by %c8_i32_41 dim 0 : vector<16x32xf32>, i32 -> vector<16x32xf32>
    %141 = vector.extract_strided_slice %49 {offsets = [0, 19], sizes = [16, 1], strides = [1, 1]} : vector<16x20xf32> to vector<16x1xf32>
    %142 = vector.broadcast %141 : vector<16x1xf32> to vector<16x32xf32>
    %143 = arith.mulf %142, %140 : vector<16x32xf32>
    %144 = arith.addf %139, %143 : vector<16x32xf32>
    %145 = arith.addf %144, %121 : vector<16x32xf32>
    %c0_42 = arith.constant 0 : index
    %c0_43 = arith.constant 0 : index
    %146 = vector.load %arg12[%c0_42, %c0_43] : memref<16x32xf32, #tpu.memory_space<vmem>>, vector<16x32xf32>
    tpu.vector_store %arg12[%c0_42, %c0_43], %145 {strides = array<i32>} : memref<16x32xf32, #tpu.memory_space<vmem>>, vector<16x32xf32>,
    return
  }
  func.func @transform_0(%arg0: i32) -> (i32, i32) {
    %c0_i32 = arith.constant 0 : i32
    %c0_i32_0 = arith.constant 0 : i32
    return %arg0, %c0_i32 : i32, i32
  }
  func.func @transform_1(%arg0: i32) -> (i32, i32) {
    %c0_i32 = arith.constant 0 : i32
    %c0_i32_0 = arith.constant 0 : i32
    return %arg0, %c0_i32 : i32, i32
  }
  func.func @transform_2(%arg0: i32) -> (i32, i32) {
    %c0_i32 = arith.constant 0 : i32
    %c0_i32_0 = arith.constant 0 : i32
    %c0_i32_1 = arith.constant 0 : i32
    return %c0_i32, %c0_i32_0 : i32, i32
  }
  func.func @transform_3(%arg0: i32) -> (i32, i32) {
    %c0_i32 = arith.constant 0 : i32
    %c0_i32_0 = arith.constant 0 : i32
    %c0_i32_1 = arith.constant 0 : i32
    return %c0_i32, %c0_i32_0 : i32, i32
  }
  func.func @transform_4(%arg0: i32) -> (i32, i32) {
    %c0_i32 = arith.constant 0 : i32
    %c0_i32_0 = arith.constant 0 : i32
    %c0_i32_1 = arith.constant 0 : i32
    return %c0_i32, %c0_i32_0 : i32, i32
  }
  func.func @transform_5(%arg0: i32) -> (i32, i32) {
    %c0_i32 = arith.constant 0 : i32
    %c0_i32_0 = arith.constant 0 : i32
    %c0_i32_1 = arith.constant 0 : i32
    return %c0_i32, %c0_i32_0 : i32, i32
  }
  func.func @transform_6(%arg0: i32) -> (i32, i32) {
    %c0_i32 = arith.constant 0 : i32
    %c0_i32_0 = arith.constant 0 : i32
    %c0_i32_1 = arith.constant 0 : i32
    return %c0_i32, %c0_i32_0 : i32, i32
  }
  func.func @transform_7(%arg0: i32) -> (i32, i32) {
    %c0_i32 = arith.constant 0 : i32
    %c0_i32_0 = arith.constant 0 : i32
    %c0_i32_1 = arith.constant 0 : i32
    return %c0_i32, %c0_i32_0 : i32, i32
  }
  func.func @transform_8(%arg0: i32) -> (i32, i32) {
    %c0_i32 = arith.constant 0 : i32
    %c0_i32_0 = arith.constant 0 : i32
    %c0_i32_1 = arith.constant 0 : i32
    return %c0_i32, %c0_i32_0 : i32, i32
  }
  func.func @transform_9(%arg0: i32) -> (i32, i32) {
    %c0_i32 = arith.constant 0 : i32
    %c0_i32_0 = arith.constant 0 : i32
    %c0_i32_1 = arith.constant 0 : i32
    return %c0_i32, %c0_i32_0 : i32, i32
  }
  func.func @transform_10(%arg0: i32) -> (i32, i32) {
    %c0_i32 = arith.constant 0 : i32
    %c0_i32_0 = arith.constant 0 : i32
    %c0_i32_1 = arith.constant 0 : i32
    return %c0_i32, %c0_i32_0 : i32, i32
  }
  func.func @transform_11(%arg0: i32) -> (i32, i32) {
    %c0_i32 = arith.constant 0 : i32
    %c0_i32_0 = arith.constant 0 : i32
    return %arg0, %c0_i32 : i32, i32
  }
}

</mosaic_0001>

<llo_original>
// kernel: tpu_custom_call.1
$region0: #{tpu_custom_call.1}
  #allocation0 [shape = 'u32[]', space=smem, size = 0x4, offset = 0x4, fixed_abs, tag = 'smem constant byte address 0x4 - core index']
  #allocation1 [shape = 'u32[144,128]{1,0:T(1,128)}', space=vmem, size = 0x12000, scoped, tag = 'internal scratch']
  %s0 = inlined_call_operand.vmem [shape: f32[32,32], index: 0, kind: input, shape index: {}]
  %s1 = inlined_call_operand.vmem [shape: f32[32,32], index: 1, kind: input, shape index: {}]
  %s2 = inlined_call_operand.vmem [shape: f32[32,32], index: 2, kind: input, shape index: {}]
  %s3 = inlined_call_operand.vmem [shape: f32[1,32], index: 3, kind: input, shape index: {}]
  %s4 = inlined_call_operand.vmem [shape: f32[32,32], index: 4, kind: input, shape index: {}]
  %s5 = inlined_call_operand.vmem [shape: f32[1,32], index: 5, kind: input, shape index: {}]
  %s6 = inlined_call_operand.vmem [shape: f32[32,128], index: 6, kind: input, shape index: {}]
  %s7 = inlined_call_operand.hbm [shape: f32[1,128], index: 7, kind: input, shape index: {}]
  %s8 = inlined_call_operand.vmem [shape: f32[128,20], index: 8, kind: input, shape index: {}]
  %s9 = inlined_call_operand.vmem [shape: f32[1,20], index: 9, kind: input, shape index: {}]
  %s10 = inlined_call_operand.vmem [shape: f32[16,20], index: 10, kind: input, shape index: {}]
  %s11 = inlined_call_operand.hbm [shape: f32[32,32], index: 11, kind: output, shape index: {}]
  %s12 = sld [smem:[#allocation0]]
  $region81: #{tpu_custom_call.1} parent=0
    _
  %s14 = ssub.s32 1, %s12
  %s15 = scalar_select 0, %s14, %s12
  $region1: #{tpu_custom_call.1} parent=0
    #allocation2 [shape = 'u8[512]{0}', space=vmem, size = 0x400, scoped, tag = 'input window, operand 7, single buffered']
    #allocation3 [shape = 's32[2]{0}', space=sflag, size = 0x8, scoped, tag = 'scoped memory for tpu_custom_call.1']
    #allocation4 [shape = 's32[2]{0}', space=sflag, size = 0x8, scoped, tag = 'scoped memory for tpu_custom_call.1']
    #allocation5 [shape = 'u8[16384]{0}', space=vmem, size = 0x4000, scoped, tag = 'output window, operand 0']
    %16 = vsyncpa [#allocation3], 0
    %17 = vsyncpa [#allocation4], 0
    %s18 = scalar_lea.sflag [#allocation4], 1
    %19 = vsyncpa %s18, 0
    loop: start=0, step=1, limit=4
    $region2: #{tpu_custom_call.1} parent=1 // loop_pre_header
      _
    $region3: #{tpu_custom_call.1} parent=1 // loop_header
      %s21 = sphi 0, %s25
      %p22 = scmp.ge.s32.totalorder %s21, 4
      %s31 = sphi 0, %s33
      %s34 = sphi 0, %s31
      %s35 = sphi 0, %s34
      %s51 = sphi 0, %s35
      %s57 = sphi 0, %s59
      %s60 = sphi 0, %s57
      %s61 = sphi 0, %s60
      %s77 = sphi 0, %s61
      %s81 = sphi 0, %s81
      %s83 = sphi 0, %s81
      %s84 = sphi 0, %s83
      %s98 = sphi 0, %s84
      %s102 = sphi 0, %s102
      %s104 = sphi 0, %s102
      %s105 = sphi 0, %s104
      %s119 = sphi 0, %s105
      %s123 = sphi 0, %s123
      %s125 = sphi 0, %s123
      %s126 = sphi 0, %s125
      %s140 = sphi 0, %s126
      %s144 = sphi 0, %s144
      %s146 = sphi 0, %s144
      %s147 = sphi 0, %s146
      %s161 = sphi 0, %s147
      %s165 = sphi 0, %s165
      %s167 = sphi 0, %s165
      %s168 = sphi 0, %s167
      %s182 = sphi 0, %s168
      %s186 = sphi 0, %s186
      %s188 = sphi 0, %s186
      %s189 = sphi 0, %s188
      %s203 = sphi 0, %s189
      %s207 = sphi 0, %s207
      %s209 = sphi 0, %s207
      %s210 = sphi 0, %s209
      %s224 = sphi 0, %s210
      %s228 = sphi 0, %s228
      %s230 = sphi 0, %s228
      %s231 = sphi 0, %s230
      %s245 = sphi 0, %s231
      %s249 = sphi 0, %s249
      %s251 = sphi 0, %s249
      %s252 = sphi 0, %s251
      %s266 = sphi 0, %s252
      %s272 = sphi 0, %s274
      %s275 = sphi 0, %s272
      %s276 = sphi 0, %s275
      %s292 = sphi 0, %s276
    $region4: #{tpu_custom_call.1} parent=1 // loop_header_branch
      %24 = sbr.rel (%p22) target = $region8
    $region5: #{tpu_custom_call.1} parent=1 // loop_body
      %s26 = ssub.s32 %s21, 1
      %s27 = ssub.s32 %s21, 2
      %s28 = sadd.s32 %s21, 1
      %s29 = ssub.s32 %s21, %s28
      %p30 = scmp.eq.s32.totalorder %s29, 0
      %s32 = sadd.s32 %s31, 1
      %s33 = scalar_select %p30, %s31, %s32
      %p36 = pneg %p30
      %p37 = scmp.eq.s32.totalorder %s21, 1
      %p38 = por %p36, %p37
      %p39 = scmp.ne.s32.totalorder %s31, %s34
      %p40 = scmp.eq.s32.totalorder %s21, 0
      %p41 = por %p39, %p40
      %p42 = scmp.ne.s32.totalorder %s31, %s34
      %p43 = scmp.eq.s32.totalorder %s26, 1
      %p44 = por %p42, %p43
      %p45 = scmp.ne.s32.totalorder %s34, %s35
      %p46 = scmp.eq.s32.totalorder %s26, 0
      %p47 = por %p45, %p46
      %p48 = scmp.ne.s32.totalorder %s34, %s35
      %p49 = scmp.eq.s32.totalorder %s27, 1
      %p50 = por %p48, %p49
      %p52 = scmp.ne.s32.totalorder %s35, %s51
      %p53 = scmp.eq.s32.totalorder %s27, 0
      %p54 = por %p52, %p53
      %s55 = ssub.s32 %s21, %s28
      %p56 = scmp.eq.s32.totalorder %s55, 0
      %s58 = sadd.s32 %s57, 1
      %s59 = scalar_select %p56, %s57, %s58
      %p62 = pneg %p56
      %p63 = scmp.eq.s32.totalorder %s21, 1
      %p64 = por %p62, %p63
      %p65 = scmp.ne.s32.totalorder %s57, %s60
      %p66 = scmp.eq.s32.totalorder %s21, 0
      %p67 = por %p65, %p66
      %p68 = scmp.ne.s32.totalorder %s57, %s60
      %p69 = scmp.eq.s32.totalorder %s26, 1
      %p70 = por %p68, %p69
      %p71 = scmp.ne.s32.totalorder %s60, %s61
      %p72 = scmp.eq.s32.totalorder %s26, 0
      %p73 = por %p71, %p72
      %p74 = scmp.ne.s32.totalorder %s60, %s61
      %p75 = scmp.eq.s32.totalorder %s27, 1
      %p76 = por %p74, %p75
      %p78 = scmp.ne.s32.totalorder %s61, %s77
      %p79 = scmp.eq.s32.totalorder %s27, 0
      %p80 = por %p78, %p79
      %s82 = sadd.s32 %s81, 1
      %p85 = scmp.eq.s32.totalorder %s21, 1
      %p86 = scmp.ne.s32.totalorder %s81, %s83
      %p87 = scmp.eq.s32.totalorder %s21, 0
      %p88 = por %p86, %p87
      %p89 = scmp.ne.s32.totalorder %s81, %s83
      %p90 = scmp.eq.s32.totalorder %s26, 1
      %p91 = por %p89, %p90
      %p92 = scmp.ne.s32.totalorder %s83, %s84
      %p93 = scmp.eq.s32.totalorder %s26, 0
      %p94 = por %p92, %p93
      %p95 = scmp.ne.s32.totalorder %s83, %s84
      %p96 = scmp.eq.s32.totalorder %s27, 1
      %p97 = por %p95, %p96
      %p99 = scmp.ne.s32.totalorder %s84, %s98
      %p100 = scmp.eq.s32.totalorder %s27, 0
      %p101 = por %p99, %p100
      %s103 = sadd.s32 %s102, 1
      %p106 = scmp.eq.s32.totalorder %s21, 1
      %p107 = scmp.ne.s32.totalorder %s102, %s104
      %p108 = scmp.eq.s32.totalorder %s21, 0
      %p109 = por %p107, %p108
      %p110 = scmp.ne.s32.totalorder %s102, %s104
      %p111 = scmp.eq.s32.totalorder %s26, 1
      %p112 = por %p110, %p111
      %p113 = scmp.ne.s32.totalorder %s104, %s105
      %p114 = scmp.eq.s32.totalorder %s26, 0
      %p115 = por %p113, %p114
      %p116 = scmp.ne.s32.totalorder %s104, %s105
      %p117 = scmp.eq.s32.totalorder %s27, 1
      %p118 = por %p116, %p117
      %p120 = scmp.ne.s32.totalorder %s105, %s119
      %p121 = scmp.eq.s32.totalorder %s27, 0
      %p122 = por %p120, %p121
      %s124 = sadd.s32 %s123, 1
      %p127 = scmp.eq.s32.totalorder %s21, 1
      %p128 = scmp.ne.s32.totalorder %s123, %s125
      %p129 = scmp.eq.s32.totalorder %s21, 0
      %p130 = por %p128, %p129
      %p131 = scmp.ne.s32.totalorder %s123, %s125
      %p132 = scmp.eq.s32.totalorder %s26, 1
      %p133 = por %p131, %p132
      %p134 = scmp.ne.s32.totalorder %s125, %s126
      %p135 = scmp.eq.s32.totalorder %s26, 0
      %p136 = por %p134, %p135
      %p137 = scmp.ne.s32.totalorder %s125, %s126
      %p138 = scmp.eq.s32.totalorder %s27, 1
      %p139 = por %p137, %p138
      %p141 = scmp.ne.s32.totalorder %s126, %s140
      %p142 = scmp.eq.s32.totalorder %s27, 0
      %p143 = por %p141, %p142
      %s145 = sadd.s32 %s144, 1
      %p148 = scmp.eq.s32.totalorder %s21, 1
      %p149 = scmp.ne.s32.totalorder %s144, %s146
      %p150 = scmp.eq.s32.totalorder %s21, 0
      %p151 = por %p149, %p150
      %p152 = scmp.ne.s32.totalorder %s144, %s146
      %p153 = scmp.eq.s32.totalorder %s26, 1
      %p154 = por %p152, %p153
      %p155 = scmp.ne.s32.totalorder %s146, %s147
      %p156 = scmp.eq.s32.totalorder %s26, 0
      %p157 = por %p155, %p156
      %p158 = scmp.ne.s32.totalorder %s146, %s147
      %p159 = scmp.eq.s32.totalorder %s27, 1
      %p160 = por %p158, %p159
      %p162 = scmp.ne.s32.totalorder %s147, %s161
      %p163 = scmp.eq.s32.totalorder %s27, 0
      %p164 = por %p162, %p163
      %s166 = sadd.s32 %s165, 1
      %p169 = scmp.eq.s32.totalorder %s21, 1
      %p170 = scmp.ne.s32.totalorder %s165, %s167
      %p171 = scmp.eq.s32.totalorder %s21, 0
      %p172 = por %p170, %p171
      %p173 = scmp.ne.s32.totalorder %s165, %s167
      %p174 = scmp.eq.s32.totalorder %s26, 1
      %p175 = por %p173, %p174
      %p176 = scmp.ne.s32.totalorder %s167, %s168
      %p177 = scmp.eq.s32.totalorder %s26, 0
      %p178 = por %p176, %p177
      %p179 = scmp.ne.s32.totalorder %s167, %s168
      %p180 = scmp.eq.s32.totalorder %s27, 1
      %p181 = por %p179, %p180
      %p183 = scmp.ne.s32.totalorder %s168, %s182
      %p184 = scmp.eq.s32.totalorder %s27, 0
      %p185 = por %p183, %p184
      %s187 = sadd.s32 %s186, 1
      %p190 = scmp.eq.s32.totalorder %s21, 1
      %p191 = scmp.ne.s32.totalorder %s186, %s188
      %p192 = scmp.eq.s32.totalorder %s21, 0
      %p193 = por %p191, %p192
      %p194 = scmp.ne.s32.totalorder %s186, %s188
      %p195 = scmp.eq.s32.totalorder %s26, 1
      %p196 = por %p194, %p195
      %p197 = scmp.ne.s32.totalorder %s188, %s189
      %p198 = scmp.eq.s32.totalorder %s26, 0
      %p199 = por %p197, %p198
      %p200 = scmp.ne.s32.totalorder %s188, %s189
      %p201 = scmp.eq.s32.totalorder %s27, 1
      %p202 = por %p200, %p201
      %p204 = scmp.ne.s32.totalorder %s189, %s203
      %p205 = scmp.eq.s32.totalorder %s27, 0
      %p206 = por %p204, %p205
      %s208 = sadd.s32 %s207, 1
      %p211 = scmp.eq.s32.totalorder %s21, 1
      %p212 = scmp.ne.s32.totalorder %s207, %s209
      %p213 = scmp.eq.s32.totalorder %s21, 0
      %p214 = por %p212, %p213
      %p215 = scmp.ne.s32.totalorder %s207, %s209
      %p216 = scmp.eq.s32.totalorder %s26, 1
      %p217 = por %p215, %p216
      %p218 = scmp.ne.s32.totalorder %s209, %s210
      %p219 = scmp.eq.s32.totalorder %s26, 0
      %p220 = por %p218, %p219
      %p221 = scmp.ne.s32.totalorder %s209, %s210
      %p222 = scmp.eq.s32.totalorder %s27, 1
      %p223 = por %p221, %p222
      %p225 = scmp.ne.s32.totalorder %s210, %s224
      %p226 = scmp.eq.s32.totalorder %s27, 0
      %p227 = por %p225, %p226
      %s229 = sadd.s32 %s228, 1
      %p232 = scmp.eq.s32.totalorder %s21, 1
      %p233 = scmp.ne.s32.totalorder %s228, %s230
      %p234 = scmp.eq.s32.totalorder %s21, 0
      %p235 = por %p233, %p234
      %p236 = scmp.ne.s32.totalorder %s228, %s230
      %p237 = scmp.eq.s32.totalorder %s26, 1
      %p238 = por %p236, %p237
      %p239 = scmp.ne.s32.totalorder %s230, %s231
      %p240 = scmp.eq.s32.totalorder %s26, 0
      %p241 = por %p239, %p240
      %p242 = scmp.ne.s32.totalorder %s230, %s231
      %p243 = scmp.eq.s32.totalorder %s27, 1
      %p244 = por %p242, %p243
      %p246 = scmp.ne.s32.totalorder %s231, %s245
      %p247 = scmp.eq.s32.totalorder %s27, 0
      %p248 = por %p246, %p247
      %s250 = sadd.s32 %s249, 1
      %p253 = scmp.eq.s32.totalorder %s21, 1
      %p254 = scmp.ne.s32.totalorder %s249, %s251
      %p255 = scmp.eq.s32.totalorder %s21, 0
      %p256 = por %p254, %p255
      %p257 = scmp.ne.s32.totalorder %s249, %s251
      %p258 = scmp.eq.s32.totalorder %s26, 1
      %p259 = por %p257, %p258
      %p260 = scmp.ne.s32.totalorder %s251, %s252
      %p261 = scmp.eq.s32.totalorder %s26, 0
      %p262 = por %p260, %p261
      %p263 = scmp.ne.s32.totalorder %s251, %s252
      %p264 = scmp.eq.s32.totalorder %s27, 1
      %p265 = por %p263, %p264
      %p267 = scmp.ne.s32.totalorder %s252, %s266
      %p268 = scmp.eq.s32.totalorder %s27, 0
      %p269 = por %p267, %p268
      %s270 = ssub.s32 %s21, %s28
      %p271 = scmp.eq.s32.totalorder %s270, 0
      %s273 = sadd.s32 %s272, 1
      %s274 = scalar_select %p271, %s272, %s273
      %p277 = pneg %p271
      %p278 = scmp.eq.s32.totalorder %s21, 1
      %p279 = por %p277, %p278
      %p280 = scmp.ne.s32.totalorder %s272, %s275
      %p281 = scmp.eq.s32.totalorder %s21, 0
      %p282 = por %p280, %p281
      %p283 = scmp.ne.s32.totalorder %s272, %s275
      %p284 = scmp.eq.s32.totalorder %s26, 1
      %p285 = por %p283, %p284
      %p286 = scmp.ne.s32.totalorder %s275, %s276
      %p287 = scmp.eq.s32.totalorder %s26, 0
      %p288 = por %p286, %p287
      %p289 = scmp.ne.s32.totalorder %s275, %s276
      %p290 = scmp.eq.s32.totalorder %s27, 1
      %p291 = por %p289, %p290
      %p293 = scmp.ne.s32.totalorder %s276, %s292
      %p294 = scmp.eq.s32.totalorder %s27, 0
      %p295 = por %p293, %p294
      %p296 = scmp.le.s32.totalorder 1, %s21
      %p297 = scmp.lt.s32.totalorder %s21, 3
      %p298 = pnand %p296, %p297
      %p299 = pneg %p298
      // Predicated region
      $region9: #{tpu_custom_call.1} parent=5 // pred_check
        _
      $region10: #{tpu_custom_call.1} parent=5 // pred_check_branch
        %301 = sbr.rel (%p298) target = $region12
      $region11: #{tpu_custom_call.1} parent=5 // pred_region
        %s302 = ssub.s32 %s21, 1
        // Predicated region
        $region13: #{tpu_custom_call.1} parent=11 // pred_check
          %p303 = pneg %p94
        $region14: #{tpu_custom_call.1} parent=11 // pred_check_branch
          %305 = sbr.rel (%p303) target = $region16
        $region15: #{tpu_custom_call.1} parent=11 // pred_region
          _
        $region16: #{tpu_custom_call.1} parent=11 // pred_fallthru
          _
        // Predicated region
        $region17: #{tpu_custom_call.1} parent=11 // pred_check
          %p306 = pneg %p115
        $region18: #{tpu_custom_call.1} parent=11 // pred_check_branch
          %308 = sbr.rel (%p306) target = $region20
        $region19: #{tpu_custom_call.1} parent=11 // pred_region
          _
        $region20: #{tpu_custom_call.1} parent=11 // pred_fallthru
          _
        // Predicated region
        $region21: #{tpu_custom_call.1} parent=11 // pred_check
          %p309 = pneg %p136
        $region22: #{tpu_custom_call.1} parent=11 // pred_check_branch
          %311 = sbr.rel (%p309) target = $region24
        $region23: #{tpu_custom_call.1} parent=11 // pred_region
          _
        $region24: #{tpu_custom_call.1} parent=11 // pred_fallthru
          _
        // Predicated region
        $region25: #{tpu_custom_call.1} parent=11 // pred_check
          %p312 = pneg %p157
        $region26: #{tpu_custom_call.1} parent=11 // pred_check_branch
          %314 = sbr.rel (%p312) target = $region28
        $region27: #{tpu_custom_call.1} parent=11 // pred_region
          _
        $region28: #{tpu_custom_call.1} parent=11 // pred_fallthru
          _
        // Predicated region
        $region29: #{tpu_custom_call.1} parent=11 // pred_check
          %p315 = pneg %p178
        $region30: #{tpu_custom_call.1} parent=11 // pred_check_branch
          %317 = sbr.rel (%p315) target = $region32
        $region31: #{tpu_custom_call.1} parent=11 // pred_region
          _
        $region32: #{tpu_custom_call.1} parent=11 // pred_fallthru
          _
        // Predicated region
        $region33: #{tpu_custom_call.1} parent=11 // pred_check
          %p318 = pneg %p199
        $region34: #{tpu_custom_call.1} parent=11 // pred_check_branch
          %320 = sbr.rel (%p318) target = $region36
        $region35: #{tpu_custom_call.1} parent=11 // pred_region
          %s322 = ssub.s32 16, 16
          %323 = vsyncadd [#allocation3], %s322
          %s325 = sshll.u32 [#allocation2], 4
          %s326 = int_to_ptr.vmem [resolvable:$true] %s325
          %328 = dma.hbm_to_vmem [thread:$0]  %s7, 16, %s326, [#allocation3]
        $region36: #{tpu_custom_call.1} parent=11 // pred_fallthru
          _
        // Predicated region
        $region37: #{tpu_custom_call.1} parent=11 // pred_check
          %p329 = pneg %p220
        $region38: #{tpu_custom_call.1} parent=11 // pred_check_branch
          %331 = sbr.rel (%p329) target = $region40
        $region39: #{tpu_custom_call.1} parent=11 // pred_region
          _
        $region40: #{tpu_custom_call.1} parent=11 // pred_fallthru
          _
        // Predicated region
        $region41: #{tpu_custom_call.1} parent=11 // pred_check
          %p332 = pneg %p241
        $region42: #{tpu_custom_call.1} parent=11 // pred_check_branch
          %334 = sbr.rel (%p332) target = $region44
        $region43: #{tpu_custom_call.1} parent=11 // pred_region
          _
        $region44: #{tpu_custom_call.1} parent=11 // pred_fallthru
          _
        // Predicated region
        $region45: #{tpu_custom_call.1} parent=11 // pred_check
          %p335 = pneg %p262
        $region46: #{tpu_custom_call.1} parent=11 // pred_check_branch
          %337 = sbr.rel (%p335) target = $region48
        $region47: #{tpu_custom_call.1} parent=11 // pred_region
          _
        $region48: #{tpu_custom_call.1} parent=11 // pred_fallthru
          _
      $region12: #{tpu_custom_call.1} parent=5 // pred_fallthru
        _
      %p338 = scmp.lt.s32.totalorder %s21, 2
      // Predicated region
      $region49: #{tpu_custom_call.1} parent=5 // pred_check
        %p339 = pneg %p338
      $region50: #{tpu_custom_call.1} parent=5 // pred_check_branch
        %341 = sbr.rel (%p339) target = $region52
      $region51: #{tpu_custom_call.1} parent=5 // pred_region
        // Predicated region
        $region53: #{tpu_custom_call.1} parent=51 // pred_check
          %p342 = pneg %p41
        $region54: #{tpu_custom_call.1} parent=51 // pred_check_branch
          %344 = sbr.rel (%p342) target = $region56
        $region55: #{tpu_custom_call.1} parent=51 // pred_region
          %s345 = smul.u32 2, %s21
          %p346 = scmp.lt.s32.totalorder %s345, 3
          %s347 = scalar_select %p346, %s345, 3
          %s348 = smul.addr %s347, 8
          %s349 = scalar_lea.vmem %s0, %s348
          %s350 = smul.u32 2, %s21
        $region56: #{tpu_custom_call.1} parent=51 // pred_fallthru
          _
        // Predicated region
        $region57: #{tpu_custom_call.1} parent=51 // pred_check
          %p351 = pneg %p67
        $region58: #{tpu_custom_call.1} parent=51 // pred_check_branch
          %353 = sbr.rel (%p351) target = $region60
        $region59: #{tpu_custom_call.1} parent=51 // pred_region
          %s354 = smul.u32 2, %s21
          %p355 = scmp.lt.s32.totalorder %s354, 3
          %s356 = scalar_select %p355, %s354, 3
          %s357 = smul.addr %s356, 8
          %s358 = scalar_lea.vmem %s1, %s357
          %s359 = smul.u32 2, %s21
        $region60: #{tpu_custom_call.1} parent=51 // pred_fallthru
          _
      $region52: #{tpu_custom_call.1} parent=5 // pred_fallthru
        _
      %p360 = scmp.le.s32.totalorder 1, %s21
      %p361 = scmp.lt.s32.totalorder %s21, 3
      %p362 = pnand %p360, %p361
      %p363 = pneg %p362
      // Predicated region
      $region61: #{tpu_custom_call.1} parent=5 // pred_check
        _
      $region62: #{tpu_custom_call.1} parent=5 // pred_check_branch
        %365 = sbr.rel (%p362) target = $region64
      $region63: #{tpu_custom_call.1} parent=5 // pred_region
        %s366 = ssub.s32 %s21, 1
        // Predicated region
        $region65: #{tpu_custom_call.1} parent=63 // pred_check
          %p367 = pneg %p199
        $region66: #{tpu_custom_call.1} parent=63 // pred_check_branch
          %369 = sbr.rel (%p367) target = $region68
        $region67: #{tpu_custom_call.1} parent=63 // pred_region
          %370 = dma.done [#allocation3], 16
        $region68: #{tpu_custom_call.1} parent=63 // pred_fallthru
          _
        %s371 = smul.u32 2, %s26
        %p372 = scmp.lt.s32.totalorder %s371, 3
        %s373 = scalar_select %p372, %s371, 3
        %s374 = smul.addr %s373, 8
        %s375 = scalar_lea.vmem %s0, %s374
        %p376 = pneg %p47
        %p377 = pneg %p44
        %s378 = smul.u32 2, %s26
        %p379 = scmp.lt.s32.totalorder %s378, 3
        %s380 = scalar_select %p379, %s378, 3
        %s381 = smul.addr %s380, 8
        %s382 = scalar_lea.vmem %s1, %s381
        %p383 = pneg %p73
        %p384 = pneg %p70
        %p385 = pneg %p94
        %p386 = pneg %p91
        %p387 = pneg %p115
        %p388 = pneg %p112
        %p389 = pneg %p136
        %p390 = pneg %p133
        %p391 = pneg %p157
        %p392 = pneg %p154
        %p393 = pneg %p178
        %p394 = pneg %p175
        %p395 = pneg %p199
        %p396 = pneg %p196
        %p397 = pneg %p220
        %p398 = pneg %p217
        %p399 = pneg %p241
        %p400 = pneg %p238
        %p401 = pneg %p262
        %p402 = pneg %p259
        %p403 = pneg %p288
        %p404 = pneg %p285
        %s405 = sand.u32 %s275, 1
        %s406 = scalar_lea.sflag [#allocation4], %s405
        %s407 = sand.u32 %s275, 1
        %s408 = smul.addr %s407, 16
        %s409 = scalar_lea.vmem [#allocation5], %s408
        %s410 = smul.u32 2, %s26
        %p411 = scmp.lt.s32.totalorder %s410, 3
        %s412 = scalar_select %p411, %s410, 3
        %s413 = smul.addr %s412, 8
        %s414 = scalar_lea.vmem %s0, %s413
        %s415 = smul.u32 2, %s26
        %s416 = smul.u32 2, %s26
        %p417 = scmp.lt.s32.totalorder %s416, 3
        %s418 = scalar_select %p417, %s416, 3
        %s419 = smul.addr %s418, 8
        %s420 = scalar_lea.vmem %s1, %s419
        %s421 = smul.u32 2, %s26
        %s422 = smul.u32 2, %s26
        %v423 = vld [vmem:[%s414] sm:$0xff]
        %v424 = vld [vmem:[%s414 + $0x8] sm:$0xff]
        %v425 = vld [vmem:[%s420] sm:$0xff]
        %v426 = vld [vmem:[%s420 + $0x8] sm:$0xff]
        %v427 = vld [vmem:[%s2] sm:$0xff]
        %v428 = vld [vmem:[%s2 + $0x8] sm:$0xff]
        %v429 = vld [vmem:[%s2 + $0x10] sm:$0xff]
        %v430 = vld [vmem:[%s2 + $0x18] sm:$0xff]
        %v431 = vld [vmem:[%s3] sm:$0x1]
        %v433 = vlaneseq
        %v434 = vshrl.u32 %v433, 7
        %v435 = vsub.s32 0, %v434
        %v436 = vrot.slane %v431, %v435
        %vm438 = vcmask 261120
        %v440 = vsel %vm438, %v423, 0
        %v443 = vsel %vm438, %v424, 0
        %445 = vmatprep.subr.mxu0 0.0
        %446 = vmatpush1.msra.mxu0 %v427
        %447 = vmatprep.subr.mxu0 0.0
        %448 = vmatpush1.msra.mxu0 %v428
        %449 = vmatprep.subr.mxu0 0.0
        %450 = vmatpush1.msra.mxu0 %v429
        %451 = vmatprep.subr.mxu0 0.0
        %452 = vmatpush1.msra.mxu0 %v430
        %453 = vmatprep.subr.mxu0 0.0
        %454 = vmatpush1.msra.mxu0 0.0
        %455 = vmatprep.subr.mxu0 0.0
        %456 = vmatpush1.msra.mxu0 0.0
        %457 = vmatprep.subr.mxu0 0.0
        %458 = vmatpush1.msra.mxu0 0.0
        %459 = vmatprep.subr.mxu0 0.0
        %460 = vmatpush1.msra.mxu0 0.0
        %461 = vmatprep.subr.mxu0 0.0
        %462 = vmatpush1.msra.mxu0 0.0
        %463 = vmatprep.subr.mxu0 0.0
        %464 = vmatpush1.msra.mxu0 0.0
        %465 = vmatprep.subr.mxu0 0.0
        %466 = vmatpush1.msra.mxu0 0.0
        %467 = vmatprep.subr.mxu0 0.0
        %468 = vmatpush1.msra.mxu0 0.0
        %469 = vmatprep.subr.mxu0 0.0
        %470 = vmatpush1.msra.mxu0 0.0
        %471 = vmatprep.subr.mxu0 0.0
        %472 = vmatpush1.msra.mxu0 0.0
        %473 = vmatprep.subr.mxu0 0.0
        %474 = vmatpush1.msra.mxu0 0.0
        %475 = vmatprep.subr.mxu0 0.0
        %476 = vmatpush1.msra.mxu0 0.0
        %477 = vmatprep.subr.mxu0 0.0
        %478 = vmatpush1.msra.mxu0 0.0
        %479 = vmatprep.subr.mxu0 0.0
        %480 = vmatpush1.msra.mxu0 0.0
        %481 = vmatprep.subr.mxu0 0.0
        %482 = vmatpush1.msra.mxu0 0.0
        %483 = vmatprep.subr.mxu0 0.0
        %484 = vmatpush1.msra.mxu0 0.0
        %485 = vmatprep.subr.mxu0 0.0
        %486 = vmatpush1.msra.mxu0 0.0
        %487 = vmatprep.subr.mxu0 0.0
        %488 = vmatpush1.msra.mxu0 0.0
        %489 = vmatprep.subr.mxu0 0.0
        %490 = vmatpush1.msra.mxu0 0.0
        %491 = vmatprep.subr.mxu0 0.0
        %492 = vmatpush1.msra.mxu0 0.0
        %493 = vmatprep.subr.mxu0 0.0
        %494 = vmatpush1.msra.mxu0 0.0
        %495 = vmatprep.subr.mxu0 0.0
        %496 = vmatpush1.msra.mxu0 0.0
        %497 = vmatprep.subr.mxu0 0.0
        %498 = vmatpush1.msra.mxu0 0.0
        %499 = vmatprep.subr.mxu0 0.0
        %500 = vmatpush1.msra.mxu0 0.0
        %501 = vmatprep.subr.mxu0 0.0
        %502 = vmatpush1.msra.mxu0 0.0
        %503 = vmatprep.subr.mxu0 0.0
        %504 = vmatpush1.msra.mxu0 0.0
        %505 = vmatprep.subr.mxu0 0.0
        %506 = vmatpush1.msra.mxu0 0.0
        %507 = vmatprep.subr.mxu0 0.0
        %508 = vmatpush1.msra.mxu0 0.0
        %509 = vmatprep.mubr.f32.mxu0 0.0
        %510 = vmatmul.mubr.f32.gmra.mrb[0].mxu0 %v440
        %v511 = vpop.f32.mrb[0].mxu0
        %v512 = vadd.f32 %v436, %v511
        %v513 = vpop.f32.mrb[0].mxu0
        %514 = vmatprep.mubr.f32.mxu0 0.0
        %515 = vmatmul.mubr.f32.gmra.mrb[0].mxu0 %v443
        %v516 = vpop.f32.mrb[0].mxu0
        %v517 = vadd.f32 %v436, %v516
        %v518 = vpop.f32.mrb[0].mxu0
        %519 = vdwg.mxu0
        %v520 = vmul.f32 %v512, 0.5
        %v521 = vmul.f32 %v517, 0.5
        %v522 = vmul.f32 %v512, 0.044715
        %v523 = vmul.f32 %v517, 0.044715
        %v524 = vmul.f32 %v522, %v512
        %v525 = vmul.f32 %v523, %v517
        %v526 = vmul.f32 %v524, %v512
        %v527 = vmul.f32 %v525, %v517
        %v528 = vadd.f32 %v512, %v526
        %v529 = vadd.f32 %v517, %v527
        %v530 = vmul.f32 %v528, 0.7978845
        %v531 = vmul.f32 %v529, 0.7978845
        %v532 = vtanh.pop %v530
        %v533 = vtanh.pop %v531
        %v534 = vadd.f32 %v532, 1.0
        %v535 = vadd.f32 %v533, 1.0
        %v536 = vmul.f32 %v520, %v534
        %v537 = vmul.f32 %v521, %v535
        %v538 = vld [vmem:[%s4] sm:$0xff]
        %v539 = vld [vmem:[%s4 + $0x8] sm:$0xff]
        %v540 = vld [vmem:[%s4 + $0x10] sm:$0xff]
        %v541 = vld [vmem:[%s4 + $0x18] sm:$0xff]
        %v542 = vld [vmem:[%s5] sm:$0x1]
        %v544 = vlaneseq
        %v545 = vshrl.u32 %v544, 7
        %v546 = vsub.s32 0, %v545
        %v547 = vrot.slane %v542, %v546
        %v550 = vsel %vm438, %v536, 0
        %v553 = vsel %vm438, %v537, 0
        %555 = vmatprep.subr.mxu0 0.0
        %556 = vmatpush1.msra.mxu0 %v538
        %557 = vmatprep.subr.mxu0 0.0
        %558 = vmatpush1.msra.mxu0 %v539
        %559 = vmatprep.subr.mxu0 0.0
        %560 = vmatpush1.msra.mxu0 %v540
        %561 = vmatprep.subr.mxu0 0.0
        %562 = vmatpush1.msra.mxu0 %v541
        %563 = vmatprep.subr.mxu0 0.0
        %564 = vmatpush1.msra.mxu0 0.0
        %565 = vmatprep.subr.mxu0 0.0
        %566 = vmatpush1.msra.mxu0 0.0
        %567 = vmatprep.subr.mxu0 0.0
        %568 = vmatpush1.msra.mxu0 0.0
        %569 = vmatprep.subr.mxu0 0.0
        %570 = vmatpush1.msra.mxu0 0.0
        %571 = vmatprep.subr.mxu0 0.0
        %572 = vmatpush1.msra.mxu0 0.0
        %573 = vmatprep.subr.mxu0 0.0
        %574 = vmatpush1.msra.mxu0 0.0
        %575 = vmatprep.subr.mxu0 0.0
        %576 = vmatpush1.msra.mxu0 0.0
        %577 = vmatprep.subr.mxu0 0.0
        %578 = vmatpush1.msra.mxu0 0.0
        %579 = vmatprep.subr.mxu0 0.0
        %580 = vmatpush1.msra.mxu0 0.0
        %581 = vmatprep.subr.mxu0 0.0
        %582 = vmatpush1.msra.mxu0 0.0
        %583 = vmatprep.subr.mxu0 0.0
        %584 = vmatpush1.msra.mxu0 0.0
        %585 = vmatprep.subr.mxu0 0.0
        %586 = vmatpush1.msra.mxu0 0.0
        %587 = vmatprep.subr.mxu0 0.0
        %588 = vmatpush1.msra.mxu0 0.0
        %589 = vmatprep.subr.mxu0 0.0
        %590 = vmatpush1.msra.mxu0 0.0
        %591 = vmatprep.subr.mxu0 0.0
        %592 = vmatpush1.msra.mxu0 0.0
        %593 = vmatprep.subr.mxu0 0.0
        %594 = vmatpush1.msra.mxu0 0.0
        %595 = vmatprep.subr.mxu0 0.0
        %596 = vmatpush1.msra.mxu0 0.0
        %597 = vmatprep.subr.mxu0 0.0
        %598 = vmatpush1.msra.mxu0 0.0
        %599 = vmatprep.subr.mxu0 0.0
        %600 = vmatpush1.msra.mxu0 0.0
        %601 = vmatprep.subr.mxu0 0.0
        %602 = vmatpush1.msra.mxu0 0.0
        %603 = vmatprep.subr.mxu0 0.0
        %604 = vmatpush1.msra.mxu0 0.0
        %605 = vmatprep.subr.mxu0 0.0
        %606 = vmatpush1.msra.mxu0 0.0
        %607 = vmatprep.subr.mxu0 0.0
        %608 = vmatpush1.msra.mxu0 0.0
        %609 = vmatprep.subr.mxu0 0.0
        %610 = vmatpush1.msra.mxu0 0.0
        %611 = vmatprep.subr.mxu0 0.0
        %612 = vmatpush1.msra.mxu0 0.0
        %613 = vmatprep.subr.mxu0 0.0
        %614 = vmatpush1.msra.mxu0 0.0
        %615 = vmatprep.subr.mxu0 0.0
        %616 = vmatpush1.msra.mxu0 0.0
        %617 = vmatprep.subr.mxu0 0.0
        %618 = vmatpush1.msra.mxu0 0.0
        %619 = vmatprep.mubr.f32.mxu0 0.0
        %620 = vmatmul.mubr.f32.gmra.mrb[0].mxu0 %v550
        %v621 = vpop.f32.mrb[0].mxu0
        %v622 = vadd.f32 %v547, %v621
        %v623 = vpop.f32.mrb[0].mxu0
        %624 = vmatprep.mubr.f32.mxu0 0.0
        %625 = vmatmul.mubr.f32.gmra.mrb[0].mxu0 %v553
        %v626 = vpop.f32.mrb[0].mxu0
        %v627 = vadd.f32 %v547, %v626
        %v628 = vpop.f32.mrb[0].mxu0
        %629 = vdwg.mxu0
        %v630 = vld [vmem:[%s6] sm:$0xff]
        %v631 = vld [vmem:[%s6 + $0x8] sm:$0xff]
        %v632 = vld [vmem:[%s6 + $0x10] sm:$0xff]
        %v633 = vld [vmem:[%s6 + $0x18] sm:$0xff]
        %v634 = vld [vmem:[#allocation2] sm:$0x1]
        %v636 = vlaneseq
        %v637 = vshrl.u32 %v636, 7
        %v638 = vsub.s32 0, %v637
        %v639 = vrot.slane %v634, %v638
        %v642 = vsel %vm438, %v425, 0
        %v645 = vsel %vm438, %v426, 0
        %647 = vmatprep.subr.mxu0 0.0
        %648 = vmatpush1.msra.mxu0 %v630
        %649 = vmatprep.subr.mxu0 0.0
        %650 = vmatpush1.msra.mxu0 %v631
        %651 = vmatprep.subr.mxu0 0.0
        %652 = vmatpush1.msra.mxu0 %v632
        %653 = vmatprep.subr.mxu0 0.0
        %654 = vmatpush1.msra.mxu0 %v633
        %655 = vmatprep.subr.mxu0 0.0
        %656 = vmatpush1.msra.mxu0 0.0
        %657 = vmatprep.subr.mxu0 0.0
        %658 = vmatpush1.msra.mxu0 0.0
        %659 = vmatprep.subr.mxu0 0.0
        %660 = vmatpush1.msra.mxu0 0.0
        %661 = vmatprep.subr.mxu0 0.0
        %662 = vmatpush1.msra.mxu0 0.0
        %663 = vmatprep.subr.mxu0 0.0
        %664 = vmatpush1.msra.mxu0 0.0
        %665 = vmatprep.subr.mxu0 0.0
        %666 = vmatpush1.msra.mxu0 0.0
        %667 = vmatprep.subr.mxu0 0.0
        %668 = vmatpush1.msra.mxu0 0.0
        %669 = vmatprep.subr.mxu0 0.0
        %670 = vmatpush1.msra.mxu0 0.0
        %671 = vmatprep.subr.mxu0 0.0
        %672 = vmatpush1.msra.mxu0 0.0
        %673 = vmatprep.subr.mxu0 0.0
        %674 = vmatpush1.msra.mxu0 0.0
        %675 = vmatprep.subr.mxu0 0.0
        %676 = vmatpush1.msra.mxu0 0.0
        %677 = vmatprep.subr.mxu0 0.0
        %678 = vmatpush1.msra.mxu0 0.0
        %679 = vmatprep.subr.mxu0 0.0
        %680 = vmatpush1.msra.mxu0 0.0
        %681 = vmatprep.subr.mxu0 0.0
        %682 = vmatpush1.msra.mxu0 0.0
        %683 = vmatprep.subr.mxu0 0.0
        %684 = vmatpush1.msra.mxu0 0.0
        %685 = vmatprep.subr.mxu0 0.0
        %686 = vmatpush1.msra.mxu0 0.0
        %687 = vmatprep.subr.mxu0 0.0
        %688 = vmatpush1.msra.mxu0 0.0
        %689 = vmatprep.subr.mxu0 0.0
        %690 = vmatpush1.msra.mxu0 0.0
        %691 = vmatprep.subr.mxu0 0.0
        %692 = vmatpush1.msra.mxu0 0.0
        %693 = vmatprep.subr.mxu0 0.0
        %694 = vmatpush1.msra.mxu0 0.0
        %695 = vmatprep.subr.mxu0 0.0
        %696 = vmatpush1.msra.mxu0 0.0
        %697 = vmatprep.subr.mxu0 0.0
        %698 = vmatpush1.msra.mxu0 0.0
        %699 = vmatprep.subr.mxu0 0.0
        %700 = vmatpush1.msra.mxu0 0.0
        %701 = vmatprep.subr.mxu0 0.0
        %702 = vmatpush1.msra.mxu0 0.0
        %703 = vmatprep.subr.mxu0 0.0
        %704 = vmatpush1.msra.mxu0 0.0
        %705 = vmatprep.subr.mxu0 0.0
        %706 = vmatpush1.msra.mxu0 0.0
        %707 = vmatprep.subr.mxu0 0.0
        %708 = vmatpush1.msra.mxu0 0.0
        %709 = vmatprep.subr.mxu0 0.0
        %710 = vmatpush1.msra.mxu0 0.0
        %711 = vmatprep.mubr.f32.mxu0 0.0
        %712 = vmatmul.mubr.f32.gmra.mrb[0].mxu0 %v642
        %v713 = vpop.f32.mrb[0].mxu0
        %v714 = vadd.f32 %v639, %v713
        %v715 = vpop.f32.mrb[0].mxu0
        %716 = vmatprep.mubr.f32.mxu0 0.0
        %717 = vmatmul.mubr.f32.gmra.mrb[0].mxu0 %v645
        %v718 = vpop.f32.mrb[0].mxu0
        %v719 = vadd.f32 %v639, %v718
        %v720 = vpop.f32.mrb[0].mxu0
        %721 = vdwg.mxu0
        %v722 = vmul.f32 %v714, 0.5
        %v723 = vmul.f32 %v719, 0.5
        %v724 = vmul.f32 %v714, 0.044715
        %v725 = vmul.f32 %v719, 0.044715
        %v726 = vmul.f32 %v724, %v714
        %v727 = vmul.f32 %v725, %v719
        %v728 = vmul.f32 %v726, %v714
        %v729 = vmul.f32 %v727, %v719
        %v730 = vadd.f32 %v714, %v728
        %v731 = vadd.f32 %v719, %v729
        %v732 = vmul.f32 %v730, 0.7978845
        %v733 = vmul.f32 %v731, 0.7978845
        %v734 = vtanh.pop %v732
        %v735 = vtanh.pop %v733
        %v736 = vadd.f32 %v734, 1.0
        %v737 = vadd.f32 %v735, 1.0
        %v738 = vmul.f32 %v722, %v736
        %v739 = vmul.f32 %v723, %v737
        %v740 = vld [vmem:[%s8] sm:$0xff]
        %v741 = vld [vmem:[%s8 + $0x8] sm:$0xff]
        %v742 = vld [vmem:[%s8 + $0x10] sm:$0xff]
        %v743 = vld [vmem:[%s8 + $0x18] sm:$0xff]
        %v744 = vld [vmem:[%s8 + $0x20] sm:$0xff]
        %v745 = vld [vmem:[%s8 + $0x28] sm:$0xff]
        %v746 = vld [vmem:[%s8 + $0x30] sm:$0xff]
        %v747 = vld [vmem:[%s8 + $0x38] sm:$0xff]
        %v748 = vld [vmem:[%s8 + $0x40] sm:$0xff]
        %v749 = vld [vmem:[%s8 + $0x48] sm:$0xff]
        %v750 = vld [vmem:[%s8 + $0x50] sm:$0xff]
        %v751 = vld [vmem:[%s8 + $0x58] sm:$0xff]
        %v752 = vld [vmem:[%s8 + $0x60] sm:$0xff]
        %v753 = vld [vmem:[%s8 + $0x68] sm:$0xff]
        %v754 = vld [vmem:[%s8 + $0x70] sm:$0xff]
        %v755 = vld [vmem:[%s8 + $0x78] sm:$0xff]
        %v756 = vld [vmem:[%s9] sm:$0x1]
        %v758 = vlaneseq
        %v759 = vshrl.u32 %v758, 7
        %v760 = vsub.s32 0, %v759
        %v761 = vrot.slane %v756, %v760
        %763 = vmatprep.subr.mxu0 0.0
        %764 = vmatpush1.msra.mxu0 %v740
        %765 = vmatprep.subr.mxu0 0.0
        %766 = vmatpush1.msra.mxu0 %v741
        %767 = vmatprep.subr.mxu0 0.0
        %768 = vmatpush1.msra.mxu0 %v742
        %769 = vmatprep.subr.mxu0 0.0
        %770 = vmatpush1.msra.mxu0 %v743
        %771 = vmatprep.subr.mxu0 0.0
        %772 = vmatpush1.msra.mxu0 %v744
        %773 = vmatprep.subr.mxu0 0.0
        %774 = vmatpush1.msra.mxu0 %v745
        %775 = vmatprep.subr.mxu0 0.0
        %776 = vmatpush1.msra.mxu0 %v746
        %777 = vmatprep.subr.mxu0 0.0
        %778 = vmatpush1.msra.mxu0 %v747
        %779 = vmatprep.subr.mxu0 0.0
        %780 = vmatpush1.msra.mxu0 %v748
        %781 = vmatprep.subr.mxu0 0.0
        %782 = vmatpush1.msra.mxu0 %v749
        %783 = vmatprep.subr.mxu0 0.0
        %784 = vmatpush1.msra.mxu0 %v750
        %785 = vmatprep.subr.mxu0 0.0
        %786 = vmatpush1.msra.mxu0 %v751
        %787 = vmatprep.subr.mxu0 0.0
        %788 = vmatpush1.msra.mxu0 %v752
        %789 = vmatprep.subr.mxu0 0.0
        %790 = vmatpush1.msra.mxu0 %v753
        %791 = vmatprep.subr.mxu0 0.0
        %792 = vmatpush1.msra.mxu0 %v754
        %793 = vmatprep.subr.mxu0 0.0
        %794 = vmatpush1.msra.mxu0 %v755
        %795 = vmatprep.subr.mxu0 0.0
        %796 = vmatpush1.msra.mxu0 0.0
        %797 = vmatprep.subr.mxu0 0.0
        %798 = vmatpush1.msra.mxu0 0.0
        %799 = vmatprep.subr.mxu0 0.0
        %800 = vmatpush1.msra.mxu0 0.0
        %801 = vmatprep.subr.mxu0 0.0
        %802 = vmatpush1.msra.mxu0 0.0
        %803 = vmatprep.subr.mxu0 0.0
        %804 = vmatpush1.msra.mxu0 0.0
        %805 = vmatprep.subr.mxu0 0.0
        %806 = vmatpush1.msra.mxu0 0.0
        %807 = vmatprep.subr.mxu0 0.0
        %808 = vmatpush1.msra.mxu0 0.0
        %809 = vmatprep.subr.mxu0 0.0
        %810 = vmatpush1.msra.mxu0 0.0
        %811 = vmatprep.subr.mxu0 0.0
        %812 = vmatpush1.msra.mxu0 0.0
        %813 = vmatprep.subr.mxu0 0.0
        %814 = vmatpush1.msra.mxu0 0.0
        %815 = vmatprep.subr.mxu0 0.0
        %816 = vmatpush1.msra.mxu0 0.0
        %817 = vmatprep.subr.mxu0 0.0
        %818 = vmatpush1.msra.mxu0 0.0
        %819 = vmatprep.subr.mxu0 0.0
        %820 = vmatpush1.msra.mxu0 0.0
        %821 = vmatprep.subr.mxu0 0.0
        %822 = vmatpush1.msra.mxu0 0.0
        %823 = vmatprep.subr.mxu0 0.0
        %824 = vmatpush1.msra.mxu0 0.0
        %825 = vmatprep.subr.mxu0 0.0
        %826 = vmatpush1.msra.mxu0 0.0
        %827 = vmatprep.mubr.f32.mxu0 0.0
        %828 = vmatmul.mubr.f32.gmra.mrb[0].mxu0 %v738
        %v829 = vpop.f32.mrb[0].mxu0
        %v830 = vadd.f32 %v761, %v829
        %v831 = vpop.f32.mrb[0].mxu0
        %832 = vmatprep.mubr.f32.mxu0 0.0
        %833 = vmatmul.mubr.f32.gmra.mrb[0].mxu0 %v739
        %v834 = vpop.f32.mrb[0].mxu0
        %v835 = vadd.f32 %v761, %v834
        %v836 = vpop.f32.mrb[0].mxu0
        %837 = vdwg.mxu0
        %839 = vset.pattern.permute.xlu0 0
        %840 = vperm.xlu0 %839, %v830
        %v841 = vpop.permute.xlu0 %840
        %844 = vset.pattern.permute.xlu0 0
        %845 = vperm.xlu0 %844, %v835
        %v846 = vpop.permute.xlu0 %845
        %v848 = vmul.f32 %v841, %v622
        %v849 = vmul.f32 %v846, %v627
        %v850 = vrot.slane %v622, 1
        %v851 = vrot.slane %v627, 1
        %v852 = vlaneseq
        %v853 = vshrl.u32 %v852, 7
        %vm854 = vcmp.lt.s32.totalorder %v853, 7
        %v855 = vsel %vm854, %v850, %v851
        %v856 = vsel %vm854, %v851, %v850
        %857 = vset.pattern.permute.xlu0 1
        %858 = vperm.xlu0 %857, %v830
        %v859 = vpop.permute.xlu0 %858
        %861 = vset.pattern.permute.xlu0 1
        %862 = vperm.xlu0 %861, %v835
        %v863 = vpop.permute.xlu0 %862
        %v865 = vmul.f32 %v859, %v855
        %v866 = vmul.f32 %v863, %v856
        %v867 = vadd.f32 %v848, %v865
        %v868 = vadd.f32 %v849, %v866
        %v869 = vrot.slane %v622, 2
        %v870 = vrot.slane %v627, 2
        %vm871 = vcmp.lt.s32.totalorder %v853, 6
        %v872 = vsel %vm871, %v869, %v870
        %v873 = vsel %vm871, %v870, %v869
        %874 = vset.pattern.permute.xlu0 2
        %875 = vperm.xlu0 %874, %v830
        %v876 = vpop.permute.xlu0 %875
        %878 = vset.pattern.permute.xlu0 2
        %879 = vperm.xlu0 %878, %v835
        %v880 = vpop.permute.xlu0 %879
        %v882 = vmul.f32 %v876, %v872
        %v883 = vmul.f32 %v880, %v873
        %v884 = vadd.f32 %v867, %v882
        %v885 = vadd.f32 %v868, %v883
        %v886 = vrot.slane %v622, 4
        %v887 = vrot.slane %v627, 4
        %vm888 = vcmp.lt.s32.totalorder %v853, 4
        %v889 = vsel %vm888, %v886, %v887
        %v890 = vsel %vm888, %v887, %v886
        %891 = vset.pattern.permute.xlu0 3
        %892 = vperm.xlu0 %891, %v830
        %v893 = vpop.permute.xlu0 %892
        %895 = vset.pattern.permute.xlu0 3
        %896 = vperm.xlu0 %895, %v835
        %v897 = vpop.permute.xlu0 %896
        %v899 = vmul.f32 %v893, %v889
        %v900 = vmul.f32 %v897, %v890
        %v901 = vadd.f32 %v884, %v899
        %v902 = vadd.f32 %v885, %v900
        %903 = vset.pattern.permute.xlu0 4
        %904 = vperm.xlu0 %903, %v830
        %v905 = vpop.permute.xlu0 %904
        %907 = vset.pattern.permute.xlu0 4
        %908 = vperm.xlu0 %907, %v835
        %v909 = vpop.permute.xlu0 %908
        %v911 = vmul.f32 %v905, %v627
        %v912 = vmul.f32 %v909, %v622
        %v913 = vadd.f32 %v901, %v911
        %v914 = vadd.f32 %v902, %v912
        %v915 = vadd.f32 %v913, %v622
        %v916 = vadd.f32 %v914, %v627
        %917 = vset.pattern.permute.xlu0 5
        %918 = vperm.xlu0 %917, %v830
        %v919 = vpop.permute.xlu0 %918
        %921 = vset.pattern.permute.xlu0 5
        %922 = vperm.xlu0 %921, %v835
        %v923 = vpop.permute.xlu0 %922
        %v925 = vmul.f32 %v919, %v915
        %v926 = vmul.f32 %v923, %v916
        %v927 = vrot.slane %v915, 1
        %v928 = vrot.slane %v916, 1
        %v929 = vsel %vm854, %v927, %v928
        %v930 = vsel %vm854, %v928, %v927
        %931 = vset.pattern.permute.xlu0 6
        %932 = vperm.xlu0 %931, %v830
        %v933 = vpop.permute.xlu0 %932
        %935 = vset.pattern.permute.xlu0 6
        %936 = vperm.xlu0 %935, %v835
        %v937 = vpop.permute.xlu0 %936
        %v939 = vmul.f32 %v933, %v929
        %v940 = vmul.f32 %v937, %v930
        %v941 = vadd.f32 %v925, %v939
        %v942 = vadd.f32 %v926, %v940
        %v943 = vrot.slane %v915, 2
        %v944 = vrot.slane %v916, 2
        %v945 = vsel %vm871, %v943, %v944
        %v946 = vsel %vm871, %v944, %v943
        %947 = vset.pattern.permute.xlu0 7
        %948 = vperm.xlu0 %947, %v830
        %v949 = vpop.permute.xlu0 %948
        %951 = vset.pattern.permute.xlu0 7
        %952 = vperm.xlu0 %951, %v835
        %v953 = vpop.permute.xlu0 %952
        %v955 = vmul.f32 %v949, %v945
        %v956 = vmul.f32 %v953, %v946
        %v957 = vadd.f32 %v941, %v955
        %v958 = vadd.f32 %v942, %v956
        %v959 = vrot.slane %v915, 4
        %v960 = vrot.slane %v916, 4
        %v961 = vsel %vm888, %v959, %v960
        %v962 = vsel %vm888, %v960, %v959
        %963 = vset.pattern.permute.xlu0 8
        %964 = vperm.xlu0 %963, %v830
        %v965 = vpop.permute.xlu0 %964
        %967 = vset.pattern.permute.xlu0 8
        %968 = vperm.xlu0 %967, %v835
        %v969 = vpop.permute.xlu0 %968
        %v971 = vmul.f32 %v965, %v961
        %v972 = vmul.f32 %v969, %v962
        %v973 = vadd.f32 %v957, %v971
        %v974 = vadd.f32 %v958, %v972
        %975 = vset.pattern.permute.xlu0 9
        %976 = vperm.xlu0 %975, %v830
        %v977 = vpop.permute.xlu0 %976
        %979 = vset.pattern.permute.xlu0 9
        %980 = vperm.xlu0 %979, %v835
        %v981 = vpop.permute.xlu0 %980
        %v983 = vmul.f32 %v977, %v916
        %v984 = vmul.f32 %v981, %v915
        %v985 = vadd.f32 %v973, %v983
        %v986 = vadd.f32 %v974, %v984
        %v987 = vadd.f32 %v985, %v915
        %v988 = vadd.f32 %v986, %v916
        %989 = vset.pattern.permute.xlu0 10
        %990 = vperm.xlu0 %989, %v830
        %v991 = vpop.permute.xlu0 %990
        %993 = vset.pattern.permute.xlu0 10
        %994 = vperm.xlu0 %993, %v835
        %v995 = vpop.permute.xlu0 %994
        %v997 = vmul.f32 %v991, %v987
        %v998 = vmul.f32 %v995, %v988
        %v999 = vrot.slane %v987, 1
        %v1000 = vrot.slane %v988, 1
        %v1001 = vsel %vm854, %v999, %v1000
        %v1002 = vsel %vm854, %v1000, %v999
        %1003 = vset.pattern.permute.xlu0 11
        %1004 = vperm.xlu0 %1003, %v830
        %v1005 = vpop.permute.xlu0 %1004
        %1007 = vset.pattern.permute.xlu0 11
        %1008 = vperm.xlu0 %1007, %v835
        %v1009 = vpop.permute.xlu0 %1008
        %v1011 = vmul.f32 %v1005, %v1001
        %v1012 = vmul.f32 %v1009, %v1002
        %v1013 = vadd.f32 %v997, %v1011
        %v1014 = vadd.f32 %v998, %v1012
        %v1015 = vrot.slane %v987, 2
        %v1016 = vrot.slane %v988, 2
        %v1017 = vsel %vm871, %v1015, %v1016
        %v1018 = vsel %vm871, %v1016, %v1015
        %1019 = vset.pattern.permute.xlu0 12
        %1020 = vperm.xlu0 %1019, %v830
        %v1021 = vpop.permute.xlu0 %1020
        %1023 = vset.pattern.permute.xlu0 12
        %1024 = vperm.xlu0 %1023, %v835
        %v1025 = vpop.permute.xlu0 %1024
        %v1027 = vmul.f32 %v1021, %v1017
        %v1028 = vmul.f32 %v1025, %v1018
        %v1029 = vadd.f32 %v1013, %v1027
        %v1030 = vadd.f32 %v1014, %v1028
        %v1031 = vrot.slane %v987, 4
        %v1032 = vrot.slane %v988, 4
        %v1033 = vsel %vm888, %v1031, %v1032
        %v1034 = vsel %vm888, %v1032, %v1031
        %1035 = vset.pattern.permute.xlu0 13
        %1036 = vperm.xlu0 %1035, %v830
        %v1037 = vpop.permute.xlu0 %1036
        %1039 = vset.pattern.permute.xlu0 13
        %1040 = vperm.xlu0 %1039, %v835
        %v1041 = vpop.permute.xlu0 %1040
        %v1043 = vmul.f32 %v1037, %v1033
        %v1044 = vmul.f32 %v1041, %v1034
        %v1045 = vadd.f32 %v1029, %v1043
        %v1046 = vadd.f32 %v1030, %v1044
        %1047 = vset.pattern.permute.xlu0 14
        %1048 = vperm.xlu0 %1047, %v830
        %v1049 = vpop.permute.xlu0 %1048
        %1051 = vset.pattern.permute.xlu0 14
        %1052 = vperm.xlu0 %1051, %v835
        %v1053 = vpop.permute.xlu0 %1052
        %v1055 = vmul.f32 %v1049, %v988
        %v1056 = vmul.f32 %v1053, %v987
        %v1057 = vadd.f32 %v1045, %v1055
        %v1058 = vadd.f32 %v1046, %v1056
        %v1059 = vadd.f32 %v1057, %v987
        %v1060 = vadd.f32 %v1058, %v988
        %1061 = vset.pattern.permute.xlu0 15
        %1062 = vperm.xlu0 %1061, %v830
        %v1063 = vpop.permute.xlu0 %1062
        %1065 = vset.pattern.permute.xlu0 15
        %1066 = vperm.xlu0 %1065, %v835
        %v1067 = vpop.permute.xlu0 %1066
        %v1069 = vmul.f32 %v1063, %v1059
        %v1070 = vmul.f32 %v1067, %v1060
        %v1071 = vrot.slane %v1059, 1
        %v1072 = vrot.slane %v1060, 1
        %v1073 = vsel %vm854, %v1071, %v1072
        %v1074 = vsel %vm854, %v1072, %v1071
        %1075 = vset.pattern.permute.xlu0 16
        %1076 = vperm.xlu0 %1075, %v830
        %v1077 = vpop.permute.xlu0 %1076
        %1079 = vset.pattern.permute.xlu0 16
        %1080 = vperm.xlu0 %1079, %v835
        %v1081 = vpop.permute.xlu0 %1080
        %v1083 = vmul.f32 %v1077, %v1073
        %v1084 = vmul.f32 %v1081, %v1074
        %v1085 = vadd.f32 %v1069, %v1083
        %v1086 = vadd.f32 %v1070, %v1084
        %v1087 = vrot.slane %v1059, 2
        %v1088 = vrot.slane %v1060, 2
        %v1089 = vsel %vm871, %v1087, %v1088
        %v1090 = vsel %vm871, %v1088, %v1087
        %1091 = vset.pattern.permute.xlu0 17
        %1092 = vperm.xlu0 %1091, %v830
        %v1093 = vpop.permute.xlu0 %1092
        %1095 = vset.pattern.permute.xlu0 17
        %1096 = vperm.xlu0 %1095, %v835
        %v1097 = vpop.permute.xlu0 %1096
        %v1099 = vmul.f32 %v1093, %v1089
        %v1100 = vmul.f32 %v1097, %v1090
        %v1101 = vadd.f32 %v1085, %v1099
        %v1102 = vadd.f32 %v1086, %v1100
        %v1103 = vrot.slane %v1059, 4
        %v1104 = vrot.slane %v1060, 4
        %v1105 = vsel %vm888, %v1103, %v1104
        %v1106 = vsel %vm888, %v1104, %v1103
        %1107 = vset.pattern.permute.xlu0 18
        %1108 = vperm.xlu0 %1107, %v830
        %v1109 = vpop.permute.xlu0 %1108
        %1111 = vset.pattern.permute.xlu0 18
        %1112 = vperm.xlu0 %1111, %v835
        %v1113 = vpop.permute.xlu0 %1112
        %v1115 = vmul.f32 %v1109, %v1105
        %v1116 = vmul.f32 %v1113, %v1106
        %v1117 = vadd.f32 %v1101, %v1115
        %v1118 = vadd.f32 %v1102, %v1116
        %1119 = vset.pattern.permute.xlu0 19
        %1120 = vperm.xlu0 %1119, %v830
        %v1121 = vpop.permute.xlu0 %1120
        %1123 = vset.pattern.permute.xlu0 19
        %1124 = vperm.xlu0 %1123, %v835
        %v1125 = vpop.permute.xlu0 %1124
        %v1127 = vmul.f32 %v1121, %v1060
        %v1128 = vmul.f32 %v1125, %v1059
        %v1129 = vadd.f32 %v1117, %v1127
        %v1130 = vadd.f32 %v1118, %v1128
        %v1131 = vadd.f32 %v1129, %v1059
        %v1132 = vadd.f32 %v1130, %v1060
        %1133 = vst.msk [vmem:[%s409] sm:$0xff] %vm438, %v1131
        %1134 = vst.msk [vmem:[%s409 + $0x8] sm:$0xff] %vm438, %v1132
        %s1135 = sand.u32 %s275, 1
        %s1136 = scalar_lea.sflag [#allocation4], %s1135
        %s1137 = sand.u32 %s275, 1
        %s1138 = smul.addr %s1137, 16
        %s1139 = scalar_lea.vmem [#allocation5], %s1138
        // Predicated region
        $region69: #{tpu_custom_call.1} parent=63 // pred_check
          %p1140 = pneg %p285
        $region70: #{tpu_custom_call.1} parent=63 // pred_check_branch
          %1142 = sbr.rel (%p1140) target = $region72
        $region71: #{tpu_custom_call.1} parent=63 // pred_region
          %s1143 = smul.u32 2, %s26
          %s1145 = ssub.s32 256, 256
          %1146 = vsyncadd %s1136, %s1145
          %s1147 = smul.addr %s1143, 128
          %s1148 = scalar_lea.hbm %s11, %s1147
          %s1149 = sshll.u32 %s1139, 4
          %s1150 = int_to_ptr.vmem [resolvable:$true] %s1149
          %1155 = dma.vmem_to_hbm [thread:$0]  %s1150, 256, %s1148, %s1136, 128, 128, 8
        $region72: #{tpu_custom_call.1} parent=63 // pred_fallthru
          _
      $region64: #{tpu_custom_call.1} parent=5 // pred_fallthru
        _
      %p1156 = scmp.le.s32.totalorder 2, %s21
      // Predicated region
      $region73: #{tpu_custom_call.1} parent=5 // pred_check
        %p1157 = pneg %p1156
      $region74: #{tpu_custom_call.1} parent=5 // pred_check_branch
        %1159 = sbr.rel (%p1157) target = $region76
      $region75: #{tpu_custom_call.1} parent=5 // pred_region
        %s1160 = ssub.s32 %s21, 2
        // Predicated region
        $region77: #{tpu_custom_call.1} parent=75 // pred_check
          %p1161 = pneg %p291
        $region78: #{tpu_custom_call.1} parent=75 // pred_check_branch
          %1163 = sbr.rel (%p1161) target = $region80
        $region79: #{tpu_custom_call.1} parent=75 // pred_region
          %s1164 = sand.u32 %s276, 1
          %s1165 = scalar_lea.sflag [#allocation4], %s1164
          %s1166 = sand.u32 %s276, 1
          %s1167 = smul.addr %s1166, 16
          %s1168 = scalar_lea.vmem [#allocation5], %s1167
          %1169 = dma.done %s1165, 256
        $region80: #{tpu_custom_call.1} parent=75 // pred_fallthru
          _
      $region76: #{tpu_custom_call.1} parent=5 // pred_fallthru
        _
    $region6: #{tpu_custom_call.1} parent=1 // loop_footer
      %s25 = sadd.s32 1, %s21
    $region7: #{tpu_custom_call.1} parent=1 // loop_footer_branch
      %20 = sbr.rel target = $region3
    $region8: #{tpu_custom_call.1} parent=1 // loop_exit
      _
    %1170 = vsyncpa [#allocation3], 1
    %s1171 = scalar_lea.sflag [#allocation3], 1
    %1172 = vsyncpa %s1171, 1
    %1173 = vsyncpa [#allocation4], 1
    %s1174 = scalar_lea.sflag [#allocation4], 1
    %1175 = vsyncpa %s1174, 1

</llo_original>
